<compile_context>
chip_gen: v7x
topology: tpu7x:2x2x1
jax: 0.10.0
libtpu: 0.0.40
codegen_flags: <defaults>
</compile_context>

<pallas_src>
import functools
import math

import jax
import jax.numpy as jnp
from jax.experimental import pallas as pl
from jax.experimental.pallas import tpu as pltpu


# ----------------------------------------------------------------------------
# Kernel: one (query-tile, kv-tile) grid step.
# ----------------------------------------------------------------------------
def _fused_mha_kernel(q_ref, k_ref, v_ref,
                      wq_ref, wk_ref, wv_ref, wfc_ref,
                      bq_ref, bk_ref, bv_ref, bfc_ref,
                      o_ref,
                      q_scr, m_scr, l_scr, acc_scr,
                      *, n_heads, inv_scale, mxu_dtype):
    ki = pl.program_id(1)
    nk = pl.num_programs(1)

    B, tq, H = q_ref.shape
    tk = k_ref.shape[1]
    Dh = H // n_heads

    # ---- first KV step of this query tile: project + scale Q, reset state --
    @pl.when(ki == 0)
    def _init():
        xq = q_ref[...].reshape(B * tq, H)                       # bf16 operand
        qp = jnp.dot(xq, wq_ref[...], preferred_element_type=jnp.float32)
        qp = (qp + bq_ref[...]) * inv_scale                      # f32, scale folded in
        q_scr[...] = qp.reshape(B, tq, H).astype(mxu_dtype)
        m_scr[...] = jnp.full(m_scr.shape, -jnp.inf, m_scr.dtype)
        l_scr[...] = jnp.zeros(l_scr.shape, l_scr.dtype)
        acc_scr[...] = jnp.zeros(acc_scr.shape, acc_scr.dtype)

    # ---- project K / V for this KV block (full-width MXU passes) -----------
    xk = k_ref[...].reshape(B * tk, H)
    kp = jnp.dot(xk, wk_ref[...], preferred_element_type=jnp.float32) + bk_ref[...]
    xv = v_ref[...].reshape(B * tk, H)
    vp = jnp.dot(xv, wv_ref[...], preferred_element_type=jnp.float32) + bv_ref[...]
    kp = kp.reshape(B, tk, H).astype(mxu_dtype)
    vp = vp.reshape(B, tk, H).astype(mxu_dtype)

    qt = q_scr[...]

    # ---- flash (online-softmax) update per head -----------------------------
    # Static head loop; all running state is VMEM-scratch-resident (no traced
    # accumulator carried across iterations), per-head contexts accumulate into
    # their lane slice of the (B, tq, H) slab so the fc below is full-H deep.
    for h in range(n_heads):
        lo, hi = h * Dh, (h + 1) * Dh
        s = jnp.einsum("bqd,bkd->bqk", qt[:, :, lo:hi], kp[:, :, lo:hi],
                       preferred_element_type=jnp.float32)       # (B, tq, tk) f32
        # TODO(synk): masked_fill(mask == 0, -1e10) would be applied to `s` here.
        m_prev = m_scr[:, :, h:h + 1]
        m_new = jnp.maximum(m_prev, jnp.max(s, axis=-1, keepdims=True))
        alpha = jnp.exp(m_prev - m_new)                          # f32 (EUP)
        p = jnp.exp(s - m_new)                                   # f32 (EUP)
        l_scr[:, :, h:h + 1] = alpha * l_scr[:, :, h:h + 1] + jnp.sum(
            p, axis=-1, keepdims=True)
        pv = jnp.einsum("bqk,bkd->bqd", p.astype(mxu_dtype), vp[:, :, lo:hi],
                        preferred_element_type=jnp.float32)      # (B, tq, Dh) f32
        acc_scr[:, :, lo:hi] = alpha * acc_scr[:, :, lo:hi] + pv
        m_scr[:, :, h:h + 1] = m_new

    # ---- last KV step: normalize, merge heads (already lane-concatenated),
    #      single full-H output projection, write the output tile -------------
    @pl.when(ki == nk - 1)
    def _finalize():
        for h in range(n_heads):
            lo, hi = h * Dh, (h + 1) * Dh
            acc_scr[:, :, lo:hi] = acc_scr[:, :, lo:hi] / l_scr[:, :, h:h + 1]
        ctx = acc_scr[...].reshape(B * tq, H).astype(mxu_dtype)
        out = jnp.dot(ctx, wfc_ref[...], preferred_element_type=jnp.float32)
        out = out + bfc_ref[...]
        o_ref[...] = out.reshape(B, tq, H).astype(o_ref.dtype)


def _pick_tile(extent, target):
    """Largest tile <= target dividing `extent`, preferring multiples of 16
    (bf16 sublane packing), else 8; falls back to the full extent."""
    if extent <= target:
        return extent
    for quantum in (16, 8):
        t = (target // quantum) * quantum
        while t >= quantum:
            if extent % t == 0:
                return t
            t -= quantum
    return extent


# ----------------------------------------------------------------------------
# Wrapper: dtype casts / bias reshapes only (no weight concatenation, no
# activation stacking) — all compute happens inside the single pallas_call.
# ----------------------------------------------------------------------------
def self_attention(params, query, key, value, n_heads, *,
                   q_tile=256, kv_tile=256,
                   mxu_dtype=jnp.bfloat16, kv_pipeline_depth=None):
    B, Sq, H = query.shape
    Sk = key.shape[1]
    assert H % n_heads == 0
    Dh = H // n_heads
    inv_scale = 1.0 / math.sqrt(Dh)      # math.sqrt: no trace-time device sync

    tq = _pick_tile(Sq, q_tile)
    tk = _pick_tile(Sk, kv_tile)
    nq, nk = Sq // tq, Sk // tk

    # bf16 MXU operands; accumulation / softmax stats stay f32 in-kernel.
    qx = query.astype(mxu_dtype)
    kx = key.astype(mxu_dtype)
    vx = value.astype(mxu_dtype)
    wq = params["wq"].astype(mxu_dtype)
    wk = params["wk"].astype(mxu_dtype)
    wv = params["wv"].astype(mxu_dtype)
    wfc = params["wfc"].astype(mxu_dtype)
    bq = params["bq"].reshape(1, H).astype(jnp.float32)
    bk = params["bk"].reshape(1, H).astype(jnp.float32)
    bv = params["bv"].reshape(1, H).astype(jnp.float32)
    bfc = params["bfc"].reshape(1, H).astype(jnp.float32)

    kv_kwargs = {}
    if kv_pipeline_depth is not None:        # e.g. 3 on v5e to hide KV DMA
        kv_kwargs["pipeline_mode"] = pl.Buffered(kv_pipeline_depth)

    kern = functools.partial(_fused_mha_kernel, n_heads=n_heads,
                             inv_scale=inv_scale, mxu_dtype=mxu_dtype)

    grid_spec = pltpu.PrefetchScalarGridSpec(
        num_scalar_prefetch=0,
        grid=(nq, nk),                                     # KV (reduction) axis last
        in_specs=[
            pl.BlockSpec((B, tq, H), lambda qi, ki: (0, qi, 0)),               # query
            pl.BlockSpec((B, tk, H), lambda qi, ki: (0, ki, 0), **kv_kwargs),  # key
            pl.BlockSpec((B, tk, H), lambda qi, ki: (0, ki, 0), **kv_kwargs),  # value
            pl.BlockSpec((H, H), lambda qi, ki: (0, 0)),                       # Wq
            pl.BlockSpec((H, H), lambda qi, ki: (0, 0)),                       # Wk
            pl.BlockSpec((H, H), lambda qi, ki: (0, 0)),                       # Wv
            pl.BlockSpec((H, H), lambda qi, ki: (0, 0)),                       # Wfc
            pl.BlockSpec((1, H), lambda qi, ki: (0, 0)),                       # bq
            pl.BlockSpec((1, H), lambda qi, ki: (0, 0)),                       # bk
            pl.BlockSpec((1, H), lambda qi, ki: (0, 0)),                       # bv
            pl.BlockSpec((1, H), lambda qi, ki: (0, 0)),                       # bfc
        ],
        out_specs=pl.BlockSpec((B, tq, H), lambda qi, ki: (0, qi, 0)),
        scratch_shapes=[
            pltpu.VMEM((B, tq, H), mxu_dtype),            # scaled Q tile
            pltpu.VMEM((B, tq, n_heads), jnp.float32),    # running max m
            pltpu.VMEM((B, tq, n_heads), jnp.float32),    # running denom l
            pltpu.VMEM((B, tq, H), jnp.float32),          # context accumulator slab
        ],
    )

    out = pl.pallas_call(
        kern,
        out_shape=jax.ShapeDtypeStruct((B, Sq, H), query.dtype),
        grid_spec=grid_spec,
        compiler_params=pltpu.CompilerParams(
            dimension_semantics=("parallel", "arbitrary"),
            # 64 MiB: fits v7x's 64 MiB physical VMEM, well above the default
            # cap on v5e/v6e (128 MiB parts).  Tiles are sized per-step anyway.
            vmem_limit_bytes=64 * 1024 * 1024),
    )(qx, kx, vx, wq, wk, wv, wfc, bq, bk, bv, bfc)
    return out


def init_params(key, hid_dim):
    ks = jax.random.split(key, 8)
    lim = 1.0 / math.sqrt(hid_dim)
    u = lambda k, shape: jax.random.uniform(k, shape, jnp.float32, -lim, lim)
    return {
        "wq": u(ks[0], (hid_dim, hid_dim)), "bq": u(ks[1], (hid_dim,)),
        "wk": u(ks[2], (hid_dim, hid_dim)), "bk": u(ks[3], (hid_dim,)),
        "wv": u(ks[4], (hid_dim, hid_dim)), "bv": u(ks[5], (hid_dim,)),
        "wfc": u(ks[6], (hid_dim, hid_dim)), "bfc": u(ks[7], (hid_dim,)),
    }


def _reference(params, q, k, v, n_heads):
    B, Sq, H = q.shape
    Dh = H // n_heads
    lin = lambda x, w, b: x @ w + b
    Q = lin(q, params["wq"], params["bq"]).reshape(B, Sq, n_heads, Dh).transpose(0, 2, 1, 3)
    K = lin(k, params["wk"], params["bk"]).reshape(B, -1, n_heads, Dh).transpose(0, 2, 1, 3)
    V = lin(v, params["wv"], params["bv"]).reshape(B, -1, n_heads, Dh).transpose(0, 2, 1, 3)
    e = jnp.einsum("bhqd,bhkd->bhqk", Q, K) / math.sqrt(Dh)
    a = jax.nn.softmax(e, axis=-1)
    x = jnp.einsum("bhqk,bhkd->bhqd", a, V).transpose(0, 2, 1, 3).reshape(B, Sq, H)
    return lin(x, params["wfc"], params["bfc"])


if __name__ == "__main__":
    B, S, H, NH = 2, 8, 32, 4

    root = jax.random.PRNGKey(0)
    kp, kq, kk, kv = jax.random.split(root, 4)
    params = init_params(kp, H)

    query = jax.random.normal(kq, (B, S, H), jnp.float32)
    key_in = jax.random.normal(kk, (B, S, H), jnp.float32)
    value = jax.random.normal(kv, (B, S, H), jnp.float32)

    ref_out = _reference(params, query, key_in, value, NH)

    # 1) Exact-precision path (f32 MXU operands) — tight numerical check.
    out_f32 = jax.block_until_ready(
        self_attention(params, query, key_in, value, NH, mxu_dtype=jnp.float32))
    assert out_f32.shape == (B, S, H)
    assert jnp.allclose(out_f32, ref_out, atol=5e-4, rtol=5e-4), "f32 mismatch vs reference"

    # 2) Performance path (bf16 MXU operands, f32 accumulation / softmax stats).
    #    Tolerance reflects bf16 operand rounding only; all reductions are f32.
    out_bf16 = jax.block_until_ready(
        self_attention(params, query, key_in, value, NH))
    assert out_bf16.shape == (B, S, H)
    assert jnp.allclose(out_bf16, ref_out, atol=5e-2, rtol=5e-2), "bf16 mismatch vs reference"

    print("KERNEL_OK")
</pallas_src>

<mosaic_0001>
module attributes {stable_mosaic.version = 11 : i64} {
  func.func @_fused_mha_kernel(%arg0: i32, %arg1: i32, %arg2: memref<2x8x32xf32, #tpu.memory_space<vmem>>, %arg3: memref<2x8x32xf32, #tpu.memory_space<vmem>>, %arg4: memref<2x8x32xf32, #tpu.memory_space<vmem>>, %arg5: memref<32x32xf32, #tpu.memory_space<vmem>>, %arg6: memref<32x32xf32, #tpu.memory_space<vmem>>, %arg7: memref<32x32xf32, #tpu.memory_space<vmem>>, %arg8: memref<32x32xf32, #tpu.memory_space<vmem>>, %arg9: memref<1x32xf32, #tpu.memory_space<vmem>>, %arg10: memref<1x32xf32, #tpu.memory_space<vmem>>, %arg11: memref<1x32xf32, #tpu.memory_space<vmem>>, %arg12: memref<1x32xf32, #tpu.memory_space<vmem>>, %arg13: memref<2x8x32xf32, #tpu.memory_space<vmem>>, %arg14: memref<2x8x32xf32, #tpu.memory_space<vmem>>, %arg15: memref<2x8x4xf32, #tpu.memory_space<vmem>>, %arg16: memref<2x8x4xf32, #tpu.memory_space<vmem>>, %arg17: memref<2x8x32xf32, #tpu.memory_space<vmem>>) attributes {dimension_semantics = [#tpu.dimension_semantics<parallel>, #tpu.dimension_semantics<arbitrary>], iteration_bounds = array<i64: 1, 1>, scalar_prefetch = 0 : i64, scratch_operands = 4 : i64, tpu.core_type = #tpu.core_type<tc>, window_params = [{transform_indices = @transform_0, window_bounds = array<i64: 2, 8, 32>}, {transform_indices = @transform_1, window_bounds = array<i64: 2, 8, 32>}, {transform_indices = @transform_2, window_bounds = array<i64: 2, 8, 32>}, {pipeline_mode = #tpu.pipeline_mode<synchronous>, transform_indices = @transform_3, window_bounds = array<i64: 32, 32>}, {pipeline_mode = #tpu.pipeline_mode<synchronous>, transform_indices = @transform_4, window_bounds = array<i64: 32, 32>}, {pipeline_mode = #tpu.pipeline_mode<synchronous>, transform_indices = @transform_5, window_bounds = array<i64: 32, 32>}, {pipeline_mode = #tpu.pipeline_mode<synchronous>, transform_indices = @transform_6, window_bounds = array<i64: 32, 32>}, {pipeline_mode = #tpu.pipeline_mode<synchronous>, transform_indices = @transform_7, window_bounds = array<i64: 1, 32>}, {pipeline_mode = #tpu.pipeline_mode<synchronous>, transform_indices = @transform_8, window_bounds = array<i64: 1, 32>}, {pipeline_mode = #tpu.pipeline_mode<synchronous>, transform_indices = @transform_9, window_bounds = array<i64: 1, 32>}, {pipeline_mode = #tpu.pipeline_mode<synchronous>, transform_indices = @transform_10, window_bounds = array<i64: 1, 32>}, {transform_indices = @transform_11, window_bounds = array<i64: 2, 8, 32>}]} {
    %c0_i32 = arith.constant 0 : i32
    %0 = arith.cmpi eq, %arg1, %c0_i32 : i32
    %1 = arith.extui %0 : i1 to i32
    %c0_i32_0 = arith.constant 0 : i32
    %2 = arith.cmpi ne, %1, %c0_i32_0 : i32
    scf.if %2 {
      %c0_102 = arith.constant 0 : index
      %c0_103 = arith.constant 0 : index
      %c0_104 = arith.constant 0 : index
      %127 = vector.load %arg2[%c0_102, %c0_103, %c0_104] : memref<2x8x32xf32, #tpu.memory_space<vmem>>, vector<2x8x32xf32>
      %128 = vector.shape_cast %127 : vector<2x8x32xf32> to vector<16x32xf32>
      %c0_105 = arith.constant 0 : index
      %c0_106 = arith.constant 0 : index
      %129 = vector.load %arg5[%c0_105, %c0_106] : memref<32x32xf32, #tpu.memory_space<vmem>>, vector<32x32xf32>
      %cst_107 = arith.constant dense<0.000000e+00> : vector<16x32xf32>
      %130 = tpu.matmul %128, %129, %cst_107 {dimension_numbers = #tpu.dot_dimension_numbers<[1], [0], [0], [1], [0, 0, 1, 1], [], []>} : vector<16x32xf32>, vector<32x32xf32>, vector<16x32xf32> -> vector<16x32xf32>
      %c0_108 = arith.constant 0 : index
      %c0_109 = arith.constant 0 : index
      %131 = vector.load %arg9[%c0_108, %c0_109] : memref<1x32xf32, #tpu.memory_space<vmem>>, vector<1x32xf32>
      %132 = vector.broadcast %131 : vector<1x32xf32> to vector<16x32xf32>
      %133 = arith.addf %130, %132 : vector<16x32xf32>
      %cst_110 = arith.constant 0.353553385 : f32
      %134 = vector.broadcast %cst_110 : f32 to vector<16x32xf32>
      %135 = arith.mulf %133, %134 : vector<16x32xf32>
      %136 = vector.shape_cast %135 : vector<16x32xf32> to vector<2x8x32xf32>
      %c0_111 = arith.constant 0 : index
      %c0_112 = arith.constant 0 : index
      %c0_113 = arith.constant 0 : index
      %137 = vector.load %arg14[%c0_111, %c0_112, %c0_113] : memref<2x8x32xf32, #tpu.memory_space<vmem>>, vector<2x8x32xf32>
      tpu.vector_store %arg14[%c0_111, %c0_112, %c0_113], %136 {strides = array<i32>} : memref<2x8x32xf32, #tpu.memory_space<vmem>>, vector<2x8x32xf32>,
      %cst_114 = arith.constant 0xFF800000 : f32
      %138 = vector.broadcast %cst_114 : f32 to vector<2x8x4xf32>
      %c0_115 = arith.constant 0 : index
      %c0_116 = arith.constant 0 : index
      %c0_117 = arith.constant 0 : index
      %139 = vector.load %arg15[%c0_115, %c0_116, %c0_117] : memref<2x8x4xf32, #tpu.memory_space<vmem>>, vector<2x8x4xf32>
      tpu.vector_store %arg15[%c0_115, %c0_116, %c0_117], %138 {strides = array<i32>} : memref<2x8x4xf32, #tpu.memory_space<vmem>>, vector<2x8x4xf32>,
      %cst_118 = arith.constant 0.000000e+00 : f32
      %140 = vector.broadcast %cst_118 : f32 to vector<2x8x4xf32>
      %c0_119 = arith.constant 0 : index
      %c0_120 = arith.constant 0 : index
      %c0_121 = arith.constant 0 : index
      %141 = vector.load %arg16[%c0_119, %c0_120, %c0_121] : memref<2x8x4xf32, #tpu.memory_space<vmem>>, vector<2x8x4xf32>
      tpu.vector_store %arg16[%c0_119, %c0_120, %c0_121], %140 {strides = array<i32>} : memref<2x8x4xf32, #tpu.memory_space<vmem>>, vector<2x8x4xf32>,
      %cst_122 = arith.constant 0.000000e+00 : f32
      %142 = vector.broadcast %cst_122 : f32 to vector<2x8x32xf32>
      %c0_123 = arith.constant 0 : index
      %c0_124 = arith.constant 0 : index
      %c0_125 = arith.constant 0 : index
      %143 = vector.load %arg17[%c0_123, %c0_124, %c0_125] : memref<2x8x32xf32, #tpu.memory_space<vmem>>, vector<2x8x32xf32>
      tpu.vector_store %arg17[%c0_123, %c0_124, %c0_125], %142 {strides = array<i32>} : memref<2x8x32xf32, #tpu.memory_space<vmem>>, vector<2x8x32xf32>,
    } else {
    }
    %c0 = arith.constant 0 : index
    %c0_1 = arith.constant 0 : index
    %c0_2 = arith.constant 0 : index
    %3 = vector.load %arg3[%c0, %c0_1, %c0_2] : memref<2x8x32xf32, #tpu.memory_space<vmem>>, vector<2x8x32xf32>
    %4 = vector.shape_cast %3 : vector<2x8x32xf32> to vector<16x32xf32>
    %c0_3 = arith.constant 0 : index
    %c0_4 = arith.constant 0 : index
    %5 = vector.load %arg6[%c0_3, %c0_4] : memref<32x32xf32, #tpu.memory_space<vmem>>, vector<32x32xf32>
    %cst = arith.constant dense<0.000000e+00> : vector<16x32xf32>
    %6 = tpu.matmul %4, %5, %cst {dimension_numbers = #tpu.dot_dimension_numbers<[1], [0], [0], [1], [0, 0, 1, 1], [], []>} : vector<16x32xf32>, vector<32x32xf32>, vector<16x32xf32> -> vector<16x32xf32>
    %c0_5 = arith.constant 0 : index
    %c0_6 = arith.constant 0 : index
    %7 = vector.load %arg10[%c0_5, %c0_6] : memref<1x32xf32, #tpu.memory_space<vmem>>, vector<1x32xf32>
    %8 = vector.broadcast %7 : vector<1x32xf32> to vector<16x32xf32>
    %9 = arith.addf %6, %8 : vector<16x32xf32>
    %c0_7 = arith.constant 0 : index
    %c0_8 = arith.constant 0 : index
    %c0_9 = arith.constant 0 : index
    %10 = vector.load %arg4[%c0_7, %c0_8, %c0_9] : memref<2x8x32xf32, #tpu.memory_space<vmem>>, vector<2x8x32xf32>
    %11 = vector.shape_cast %10 : vector<2x8x32xf32> to vector<16x32xf32>
    %c0_10 = arith.constant 0 : index
    %c0_11 = arith.constant 0 : index
    %12 = vector.load %arg7[%c0_10, %c0_11] : memref<32x32xf32, #tpu.memory_space<vmem>>, vector<32x32xf32>
    %cst_12 = arith.constant dense<0.000000e+00> : vector<16x32xf32>
    %13 = tpu.matmul %11, %12, %cst_12 {dimension_numbers = #tpu.dot_dimension_numbers<[1], [0], [0], [1], [0, 0, 1, 1], [], []>} : vector<16x32xf32>, vector<32x32xf32>, vector<16x32xf32> -> vector<16x32xf32>
    %c0_13 = arith.constant 0 : index
    %c0_14 = arith.constant 0 : index
    %14 = vector.load %arg11[%c0_13, %c0_14] : memref<1x32xf32, #tpu.memory_space<vmem>>, vector<1x32xf32>
    %15 = vector.broadcast %14 : vector<1x32xf32> to vector<16x32xf32>
    %16 = arith.addf %13, %15 : vector<16x32xf32>
    %17 = vector.shape_cast %9 : vector<16x32xf32> to vector<2x8x32xf32>
    %18 = vector.shape_cast %16 : vector<16x32xf32> to vector<2x8x32xf32>
    %c0_15 = arith.constant 0 : index
    %c0_16 = arith.constant 0 : index
    %c0_17 = arith.constant 0 : index
    %19 = vector.load %arg14[%c0_15, %c0_16, %c0_17] : memref<2x8x32xf32, #tpu.memory_space<vmem>>, vector<2x8x32xf32>
    %20 = vector.extract_strided_slice %19 {offsets = [0, 0, 0], sizes = [2, 8, 8], strides = [1, 1, 1]} : vector<2x8x32xf32> to vector<2x8x8xf32>
    %21 = vector.extract_strided_slice %17 {offsets = [0, 0, 0], sizes = [2, 8, 8], strides = [1, 1, 1]} : vector<2x8x32xf32> to vector<2x8x8xf32>
    "tpu.trace_start"() <{level = 10 : i32, message = "bqd,bkd->bqk"}> : () -> ()
    %cst_18 = arith.constant dense<0.000000e+00> : vector<2x8x8xf32>
    %22 = tpu.matmul %20, %21, %cst_18 {dimension_numbers = #tpu.dot_dimension_numbers<[2], [2], [1], [1], [0, 0, 0, 1, 1, 1], [0], [0]>} : vector<2x8x8xf32>, vector<2x8x8xf32>, vector<2x8x8xf32> -> vector<2x8x8xf32>
    "tpu.trace_stop"() : () -> ()
    %c0_19 = arith.constant 0 : index
    %c0_20 = arith.constant 0 : index
    %c0_21 = arith.constant 0 : index
    %23 = vector.load %arg15[%c0_19, %c0_20, %c0_21] : memref<2x8x4xf32, #tpu.memory_space<vmem>>, vector<2x8x1xf32>
    %cst_22 = arith.constant dense<0xFF800000> : vector<2x8xf32>
    %24 = vector.multi_reduction <maximumf>, %22, %cst_22 [2] : vector<2x8x8xf32> to vector<2x8xf32>
    %25 = vector.shape_cast %24 : vector<2x8xf32> to vector<2x8x1xf32>
    %26 = arith.maximumf %23, %25 : vector<2x8x1xf32>
    %27 = arith.subf %23, %26 : vector<2x8x1xf32>
    %28 = math.exp %27 : vector<2x8x1xf32>
    %29 = vector.broadcast %26 : vector<2x8x1xf32> to vector<2x8x8xf32>
    %30 = arith.subf %22, %29 : vector<2x8x8xf32>
    %31 = math.exp %30 : vector<2x8x8xf32>
    %c0_23 = arith.constant 0 : index
    %c0_24 = arith.constant 0 : index
    %c0_25 = arith.constant 0 : index
    %32 = vector.load %arg16[%c0_23, %c0_24, %c0_25] : memref<2x8x4xf32, #tpu.memory_space<vmem>>, vector<2x8x1xf32>
    %33 = arith.mulf %28, %32 : vector<2x8x1xf32>
    %cst_26 = arith.constant dense<0.000000e+00> : vector<2x8xf32>
    %34 = vector.multi_reduction <add>, %31, %cst_26 [2] : vector<2x8x8xf32> to vector<2x8xf32>
    %35 = vector.shape_cast %34 : vector<2x8xf32> to vector<2x8x1xf32>
    %36 = arith.addf %33, %35 : vector<2x8x1xf32>
    %c0_27 = arith.constant 0 : index
    %c0_28 = arith.constant 0 : index
    %c0_29 = arith.constant 0 : index
    %37 = vector.load %arg16[%c0_27, %c0_28, %c0_29] : memref<2x8x4xf32, #tpu.memory_space<vmem>>, vector<2x8x1xf32>
    tpu.vector_store %arg16[%c0_27, %c0_28, %c0_29], %36 {strides = array<i32>} : memref<2x8x4xf32, #tpu.memory_space<vmem>>, vector<2x8x1xf32>,
    %38 = vector.extract_strided_slice %18 {offsets = [0, 0, 0], sizes = [2, 8, 8], strides = [1, 1, 1]} : vector<2x8x32xf32> to vector<2x8x8xf32>
    "tpu.trace_start"() <{level = 10 : i32, message = "bqk,bkd->bqd"}> : () -> ()
    %cst_30 = arith.constant dense<0.000000e+00> : vector<2x8x8xf32>
    %39 = tpu.matmul %31, %38, %cst_30 {dimension_numbers = #tpu.dot_dimension_numbers<[2], [1], [1], [2], [0, 0, 0, 1, 1, 2], [0], [0]>} : vector<2x8x8xf32>, vector<2x8x8xf32>, vector<2x8x8xf32> -> vector<2x8x8xf32>
    "tpu.trace_stop"() : () -> ()
    %c0_31 = arith.constant 0 : index
    %c0_32 = arith.constant 0 : index
    %c0_33 = arith.constant 0 : index
    %40 = vector.load %arg17[%c0_31, %c0_32, %c0_33] : memref<2x8x32xf32, #tpu.memory_space<vmem>>, vector<2x8x8xf32>
    %41 = vector.broadcast %28 : vector<2x8x1xf32> to vector<2x8x8xf32>
    %42 = arith.mulf %41, %40 : vector<2x8x8xf32>
    %43 = arith.addf %42, %39 : vector<2x8x8xf32>
    %c0_34 = arith.constant 0 : index
    %c0_35 = arith.constant 0 : index
    %c0_36 = arith.constant 0 : index
    %44 = vector.load %arg17[%c0_34, %c0_35, %c0_36] : memref<2x8x32xf32, #tpu.memory_space<vmem>>, vector<2x8x8xf32>
    tpu.vector_store %arg17[%c0_34, %c0_35, %c0_36], %43 {strides = array<i32>} : memref<2x8x32xf32, #tpu.memory_space<vmem>>, vector<2x8x8xf32>,
    %c0_37 = arith.constant 0 : index
    %c0_38 = arith.constant 0 : index
    %c0_39 = arith.constant 0 : index
    %45 = vector.load %arg15[%c0_37, %c0_38, %c0_39] : memref<2x8x4xf32, #tpu.memory_space<vmem>>, vector<2x8x1xf32>
    tpu.vector_store %arg15[%c0_37, %c0_38, %c0_39], %26 {strides = array<i32>} : memref<2x8x4xf32, #tpu.memory_space<vmem>>, vector<2x8x1xf32>,
    %46 = vector.extract_strided_slice %19 {offsets = [0, 0, 8], sizes = [2, 8, 8], strides = [1, 1, 1]} : vector<2x8x32xf32> to vector<2x8x8xf32>
    %47 = vector.extract_strided_slice %17 {offsets = [0, 0, 8], sizes = [2, 8, 8], strides = [1, 1, 1]} : vector<2x8x32xf32> to vector<2x8x8xf32>
    "tpu.trace_start"() <{level = 10 : i32, message = "bqd,bkd->bqk"}> : () -> ()
    %cst_40 = arith.constant dense<0.000000e+00> : vector<2x8x8xf32>
    %48 = tpu.matmul %46, %47, %cst_40 {dimension_numbers = #tpu.dot_dimension_numbers<[2], [2], [1], [1], [0, 0, 0, 1, 1, 1], [0], [0]>} : vector<2x8x8xf32>, vector<2x8x8xf32>, vector<2x8x8xf32> -> vector<2x8x8xf32>
    "tpu.trace_stop"() : () -> ()
    %c0_41 = arith.constant 0 : index
    %c0_42 = arith.constant 0 : index
    %c1 = arith.constant 1 : index
    %49 = vector.load %arg15[%c0_41, %c0_42, %c1] : memref<2x8x4xf32, #tpu.memory_space<vmem>>, vector<2x8x1xf32>
    %cst_43 = arith.constant dense<0xFF800000> : vector<2x8xf32>
    %50 = vector.multi_reduction <maximumf>, %48, %cst_43 [2] : vector<2x8x8xf32> to vector<2x8xf32>
    %51 = vector.shape_cast %50 : vector<2x8xf32> to vector<2x8x1xf32>
    %52 = arith.maximumf %49, %51 : vector<2x8x1xf32>
    %53 = arith.subf %49, %52 : vector<2x8x1xf32>
    %54 = math.exp %53 : vector<2x8x1xf32>
    %55 = vector.broadcast %52 : vector<2x8x1xf32> to vector<2x8x8xf32>
    %56 = arith.subf %48, %55 : vector<2x8x8xf32>
    %57 = math.exp %56 : vector<2x8x8xf32>
    %c0_44 = arith.constant 0 : index
    %c0_45 = arith.constant 0 : index
    %c1_46 = arith.constant 1 : index
    %58 = vector.load %arg16[%c0_44, %c0_45, %c1_46] : memref<2x8x4xf32, #tpu.memory_space<vmem>>, vector<2x8x1xf32>
    %59 = arith.mulf %54, %58 : vector<2x8x1xf32>
    %cst_47 = arith.constant dense<0.000000e+00> : vector<2x8xf32>
    %60 = vector.multi_reduction <add>, %57, %cst_47 [2] : vector<2x8x8xf32> to vector<2x8xf32>
    %61 = vector.shape_cast %60 : vector<2x8xf32> to vector<2x8x1xf32>
    %62 = arith.addf %59, %61 : vector<2x8x1xf32>
    %c0_48 = arith.constant 0 : index
    %c0_49 = arith.constant 0 : index
    %c1_50 = arith.constant 1 : index
    %63 = vector.load %arg16[%c0_48, %c0_49, %c1_50] : memref<2x8x4xf32, #tpu.memory_space<vmem>>, vector<2x8x1xf32>
    tpu.vector_store %arg16[%c0_48, %c0_49, %c1_50], %62 {strides = array<i32>} : memref<2x8x4xf32, #tpu.memory_space<vmem>>, vector<2x8x1xf32>,
    %64 = vector.extract_strided_slice %18 {offsets = [0, 0, 8], sizes = [2, 8, 8], strides = [1, 1, 1]} : vector<2x8x32xf32> to vector<2x8x8xf32>
    "tpu.trace_start"() <{level = 10 : i32, message = "bqk,bkd->bqd"}> : () -> ()
    %cst_51 = arith.constant dense<0.000000e+00> : vector<2x8x8xf32>
    %65 = tpu.matmul %57, %64, %cst_51 {dimension_numbers = #tpu.dot_dimension_numbers<[2], [1], [1], [2], [0, 0, 0, 1, 1, 2], [0], [0]>} : vector<2x8x8xf32>, vector<2x8x8xf32>, vector<2x8x8xf32> -> vector<2x8x8xf32>
    "tpu.trace_stop"() : () -> ()
    %c0_52 = arith.constant 0 : index
    %c0_53 = arith.constant 0 : index
    %c8 = arith.constant 8 : index
    %66 = vector.load %arg17[%c0_52, %c0_53, %c8] : memref<2x8x32xf32, #tpu.memory_space<vmem>>, vector<2x8x8xf32>
    %67 = vector.broadcast %54 : vector<2x8x1xf32> to vector<2x8x8xf32>
    %68 = arith.mulf %67, %66 : vector<2x8x8xf32>
    %69 = arith.addf %68, %65 : vector<2x8x8xf32>
    %c0_54 = arith.constant 0 : index
    %c0_55 = arith.constant 0 : index
    %c8_56 = arith.constant 8 : index
    %70 = vector.load %arg17[%c0_54, %c0_55, %c8_56] : memref<2x8x32xf32, #tpu.memory_space<vmem>>, vector<2x8x8xf32>
    tpu.vector_store %arg17[%c0_54, %c0_55, %c8_56], %69 {strides = array<i32>} : memref<2x8x32xf32, #tpu.memory_space<vmem>>, vector<2x8x8xf32>,
    %c0_57 = arith.constant 0 : index
    %c0_58 = arith.constant 0 : index
    %c1_59 = arith.constant 1 : index
    %71 = vector.load %arg15[%c0_57, %c0_58, %c1_59] : memref<2x8x4xf32, #tpu.memory_space<vmem>>, vector<2x8x1xf32>
    tpu.vector_store %arg15[%c0_57, %c0_58, %c1_59], %52 {strides = array<i32>} : memref<2x8x4xf32, #tpu.memory_space<vmem>>, vector<2x8x1xf32>,
    %72 = vector.extract_strided_slice %19 {offsets = [0, 0, 16], sizes = [2, 8, 8], strides = [1, 1, 1]} : vector<2x8x32xf32> to vector<2x8x8xf32>
    %73 = vector.extract_strided_slice %17 {offsets = [0, 0, 16], sizes = [2, 8, 8], strides = [1, 1, 1]} : vector<2x8x32xf32> to vector<2x8x8xf32>
    "tpu.trace_start"() <{level = 10 : i32, message = "bqd,bkd->bqk"}> : () -> ()
    %cst_60 = arith.constant dense<0.000000e+00> : vector<2x8x8xf32>
    %74 = tpu.matmul %72, %73, %cst_60 {dimension_numbers = #tpu.dot_dimension_numbers<[2], [2], [1], [1], [0, 0, 0, 1, 1, 1], [0], [0]>} : vector<2x8x8xf32>, vector<2x8x8xf32>, vector<2x8x8xf32> -> vector<2x8x8xf32>
    "tpu.trace_stop"() : () -> ()
    %c0_61 = arith.constant 0 : index
    %c0_62 = arith.constant 0 : index
    %c2 = arith.constant 2 : index
    %75 = vector.load %arg15[%c0_61, %c0_62, %c2] : memref<2x8x4xf32, #tpu.memory_space<vmem>>, vector<2x8x1xf32>
    %cst_63 = arith.constant dense<0xFF800000> : vector<2x8xf32>
    %76 = vector.multi_reduction <maximumf>, %74, %cst_63 [2] : vector<2x8x8xf32> to vector<2x8xf32>
    %77 = vector.shape_cast %76 : vector<2x8xf32> to vector<2x8x1xf32>
    %78 = arith.maximumf %75, %77 : vector<2x8x1xf32>
    %79 = arith.subf %75, %78 : vector<2x8x1xf32>
    %80 = math.exp %79 : vector<2x8x1xf32>
    %81 = vector.broadcast %78 : vector<2x8x1xf32> to vector<2x8x8xf32>
    %82 = arith.subf %74, %81 : vector<2x8x8xf32>
    %83 = math.exp %82 : vector<2x8x8xf32>
    %c0_64 = arith.constant 0 : index
    %c0_65 = arith.constant 0 : index
    %c2_66 = arith.constant 2 : index
    %84 = vector.load %arg16[%c0_64, %c0_65, %c2_66] : memref<2x8x4xf32, #tpu.memory_space<vmem>>, vector<2x8x1xf32>
    %85 = arith.mulf %80, %84 : vector<2x8x1xf32>
    %cst_67 = arith.constant dense<0.000000e+00> : vector<2x8xf32>
    %86 = vector.multi_reduction <add>, %83, %cst_67 [2] : vector<2x8x8xf32> to vector<2x8xf32>
    %87 = vector.shape_cast %86 : vector<2x8xf32> to vector<2x8x1xf32>
    %88 = arith.addf %85, %87 : vector<2x8x1xf32>
    %c0_68 = arith.constant 0 : index
    %c0_69 = arith.constant 0 : index
    %c2_70 = arith.constant 2 : index
    %89 = vector.load %arg16[%c0_68, %c0_69, %c2_70] : memref<2x8x4xf32, #tpu.memory_space<vmem>>, vector<2x8x1xf32>
    tpu.vector_store %arg16[%c0_68, %c0_69, %c2_70], %88 {strides = array<i32>} : memref<2x8x4xf32, #tpu.memory_space<vmem>>, vector<2x8x1xf32>,
    %90 = vector.extract_strided_slice %18 {offsets = [0, 0, 16], sizes = [2, 8, 8], strides = [1, 1, 1]} : vector<2x8x32xf32> to vector<2x8x8xf32>
    "tpu.trace_start"() <{level = 10 : i32, message = "bqk,bkd->bqd"}> : () -> ()
    %cst_71 = arith.constant dense<0.000000e+00> : vector<2x8x8xf32>
    %91 = tpu.matmul %83, %90, %cst_71 {dimension_numbers = #tpu.dot_dimension_numbers<[2], [1], [1], [2], [0, 0, 0, 1, 1, 2], [0], [0]>} : vector<2x8x8xf32>, vector<2x8x8xf32>, vector<2x8x8xf32> -> vector<2x8x8xf32>
    "tpu.trace_stop"() : () -> ()
    %c0_72 = arith.constant 0 : index
    %c0_73 = arith.constant 0 : index
    %c16 = arith.constant 16 : index
    %92 = vector.load %arg17[%c0_72, %c0_73, %c16] : memref<2x8x32xf32, #tpu.memory_space<vmem>>, vector<2x8x8xf32>
    %93 = vector.broadcast %80 : vector<2x8x1xf32> to vector<2x8x8xf32>
    %94 = arith.mulf %93, %92 : vector<2x8x8xf32>
    %95 = arith.addf %94, %91 : vector<2x8x8xf32>
    %c0_74 = arith.constant 0 : index
    %c0_75 = arith.constant 0 : index
    %c16_76 = arith.constant 16 : index
    %96 = vector.load %arg17[%c0_74, %c0_75, %c16_76] : memref<2x8x32xf32, #tpu.memory_space<vmem>>, vector<2x8x8xf32>
    tpu.vector_store %arg17[%c0_74, %c0_75, %c16_76], %95 {strides = array<i32>} : memref<2x8x32xf32, #tpu.memory_space<vmem>>, vector<2x8x8xf32>,
    %c0_77 = arith.constant 0 : index
    %c0_78 = arith.constant 0 : index
    %c2_79 = arith.constant 2 : index
    %97 = vector.load %arg15[%c0_77, %c0_78, %c2_79] : memref<2x8x4xf32, #tpu.memory_space<vmem>>, vector<2x8x1xf32>
    tpu.vector_store %arg15[%c0_77, %c0_78, %c2_79], %78 {strides = array<i32>} : memref<2x8x4xf32, #tpu.memory_space<vmem>>, vector<2x8x1xf32>,
    %98 = vector.extract_strided_slice %19 {offsets = [0, 0, 24], sizes = [2, 8, 8], strides = [1, 1, 1]} : vector<2x8x32xf32> to vector<2x8x8xf32>
    %99 = vector.extract_strided_slice %17 {offsets = [0, 0, 24], sizes = [2, 8, 8], strides = [1, 1, 1]} : vector<2x8x32xf32> to vector<2x8x8xf32>
    "tpu.trace_start"() <{level = 10 : i32, message = "bqd,bkd->bqk"}> : () -> ()
    %cst_80 = arith.constant dense<0.000000e+00> : vector<2x8x8xf32>
    %100 = tpu.matmul %98, %99, %cst_80 {dimension_numbers = #tpu.dot_dimension_numbers<[2], [2], [1], [1], [0, 0, 0, 1, 1, 1], [0], [0]>} : vector<2x8x8xf32>, vector<2x8x8xf32>, vector<2x8x8xf32> -> vector<2x8x8xf32>
    "tpu.trace_stop"() : () -> ()
    %c0_81 = arith.constant 0 : index
    %c0_82 = arith.constant 0 : index
    %c3 = arith.constant 3 : index
    %101 = vector.load %arg15[%c0_81, %c0_82, %c3] : memref<2x8x4xf32, #tpu.memory_space<vmem>>, vector<2x8x1xf32>
    %cst_83 = arith.constant dense<0xFF800000> : vector<2x8xf32>
    %102 = vector.multi_reduction <maximumf>, %100, %cst_83 [2] : vector<2x8x8xf32> to vector<2x8xf32>
    %103 = vector.shape_cast %102 : vector<2x8xf32> to vector<2x8x1xf32>
    %104 = arith.maximumf %101, %103 : vector<2x8x1xf32>
    %105 = arith.subf %101, %104 : vector<2x8x1xf32>
    %106 = math.exp %105 : vector<2x8x1xf32>
    %107 = vector.broadcast %104 : vector<2x8x1xf32> to vector<2x8x8xf32>
    %108 = arith.subf %100, %107 : vector<2x8x8xf32>
    %109 = math.exp %108 : vector<2x8x8xf32>
    %c0_84 = arith.constant 0 : index
    %c0_85 = arith.constant 0 : index
    %c3_86 = arith.constant 3 : index
    %110 = vector.load %arg16[%c0_84, %c0_85, %c3_86] : memref<2x8x4xf32, #tpu.memory_space<vmem>>, vector<2x8x1xf32>
    %111 = arith.mulf %106, %110 : vector<2x8x1xf32>
    %cst_87 = arith.constant dense<0.000000e+00> : vector<2x8xf32>
    %112 = vector.multi_reduction <add>, %109, %cst_87 [2] : vector<2x8x8xf32> to vector<2x8xf32>
    %113 = vector.shape_cast %112 : vector<2x8xf32> to vector<2x8x1xf32>
    %114 = arith.addf %111, %113 : vector<2x8x1xf32>
    %c0_88 = arith.constant 0 : index
    %c0_89 = arith.constant 0 : index
    %c3_90 = arith.constant 3 : index
    %115 = vector.load %arg16[%c0_88, %c0_89, %c3_90] : memref<2x8x4xf32, #tpu.memory_space<vmem>>, vector<2x8x1xf32>
    tpu.vector_store %arg16[%c0_88, %c0_89, %c3_90], %114 {strides = array<i32>} : memref<2x8x4xf32, #tpu.memory_space<vmem>>, vector<2x8x1xf32>,
    %116 = vector.extract_strided_slice %18 {offsets = [0, 0, 24], sizes = [2, 8, 8], strides = [1, 1, 1]} : vector<2x8x32xf32> to vector<2x8x8xf32>
    "tpu.trace_start"() <{level = 10 : i32, message = "bqk,bkd->bqd"}> : () -> ()
    %cst_91 = arith.constant dense<0.000000e+00> : vector<2x8x8xf32>
    %117 = tpu.matmul %109, %116, %cst_91 {dimension_numbers = #tpu.dot_dimension_numbers<[2], [1], [1], [2], [0, 0, 0, 1, 1, 2], [0], [0]>} : vector<2x8x8xf32>, vector<2x8x8xf32>, vector<2x8x8xf32> -> vector<2x8x8xf32>
    "tpu.trace_stop"() : () -> ()
    %c0_92 = arith.constant 0 : index
    %c0_93 = arith.constant 0 : index
    %c24 = arith.constant 24 : index
    %118 = vector.load %arg17[%c0_92, %c0_93, %c24] : memref<2x8x32xf32, #tpu.memory_space<vmem>>, vector<2x8x8xf32>
    %119 = vector.broadcast %106 : vector<2x8x1xf32> to vector<2x8x8xf32>
    %120 = arith.mulf %119, %118 : vector<2x8x8xf32>
    %121 = arith.addf %120, %117 : vector<2x8x8xf32>
    %c0_94 = arith.constant 0 : index
    %c0_95 = arith.constant 0 : index
    %c24_96 = arith.constant 24 : index
    %122 = vector.load %arg17[%c0_94, %c0_95, %c24_96] : memref<2x8x32xf32, #tpu.memory_space<vmem>>, vector<2x8x8xf32>
    tpu.vector_store %arg17[%c0_94, %c0_95, %c24_96], %121 {strides = array<i32>} : memref<2x8x32xf32, #tpu.memory_space<vmem>>, vector<2x8x8xf32>,
    %c0_97 = arith.constant 0 : index
    %c0_98 = arith.constant 0 : index
    %c3_99 = arith.constant 3 : index
    %123 = vector.load %arg15[%c0_97, %c0_98, %c3_99] : memref<2x8x4xf32, #tpu.memory_space<vmem>>, vector<2x8x1xf32>
    tpu.vector_store %arg15[%c0_97, %c0_98, %c3_99], %104 {strides = array<i32>} : memref<2x8x4xf32, #tpu.memory_space<vmem>>, vector<2x8x1xf32>,
    %c0_i32_100 = arith.constant 0 : i32
    %124 = arith.cmpi eq, %arg1, %c0_i32_100 : i32
    %125 = arith.extui %124 : i1 to i32
    %c0_i32_101 = arith.constant 0 : i32
    %126 = arith.cmpi ne, %125, %c0_i32_101 : i32
    scf.if %126 {
      %c0_102 = arith.constant 0 : index
      %c0_103 = arith.constant 0 : index
      %c0_104 = arith.constant 0 : index
      %127 = vector.load %arg17[%c0_102, %c0_103, %c0_104] : memref<2x8x32xf32, #tpu.memory_space<vmem>>, vector<2x8x8xf32>
      %c0_105 = arith.constant 0 : index
      %c0_106 = arith.constant 0 : index
      %c0_107 = arith.constant 0 : index
      %128 = vector.load %arg16[%c0_105, %c0_106, %c0_107] : memref<2x8x4xf32, #tpu.memory_space<vmem>>, vector<2x8x1xf32>
      %129 = vector.broadcast %128 : vector<2x8x1xf32> to vector<2x8x8xf32>
      %130 = arith.divf %127, %129 : vector<2x8x8xf32>
      %c0_108 = arith.constant 0 : index
      %c0_109 = arith.constant 0 : index
      %c0_110 = arith.constant 0 : index
      %131 = vector.load %arg17[%c0_108, %c0_109, %c0_110] : memref<2x8x32xf32, #tpu.memory_space<vmem>>, vector<2x8x8xf32>
      tpu.vector_store %arg17[%c0_108, %c0_109, %c0_110], %130 {strides = array<i32>} : memref<2x8x32xf32, #tpu.memory_space<vmem>>, vector<2x8x8xf32>,
      %c0_111 = arith.constant 0 : index
      %c0_112 = arith.constant 0 : index
      %c8_113 = arith.constant 8 : index
      %132 = vector.load %arg17[%c0_111, %c0_112, %c8_113] : memref<2x8x32xf32, #tpu.memory_space<vmem>>, vector<2x8x8xf32>
      %c0_114 = arith.constant 0 : index
      %c0_115 = arith.constant 0 : index
      %c1_116 = arith.constant 1 : index
      %133 = vector.load %arg16[%c0_114, %c0_115, %c1_116] : memref<2x8x4xf32, #tpu.memory_space<vmem>>, vector<2x8x1xf32>
      %134 = vector.broadcast %133 : vector<2x8x1xf32> to vector<2x8x8xf32>
      %135 = arith.divf %132, %134 : vector<2x8x8xf32>
      %c0_117 = arith.constant 0 : index
      %c0_118 = arith.constant 0 : index
      %c8_119 = arith.constant 8 : index
      %136 = vector.load %arg17[%c0_117, %c0_118, %c8_119] : memref<2x8x32xf32, #tpu.memory_space<vmem>>, vector<2x8x8xf32>
      tpu.vector_store %arg17[%c0_117, %c0_118, %c8_119], %135 {strides = array<i32>} : memref<2x8x32xf32, #tpu.memory_space<vmem>>, vector<2x8x8xf32>,
      %c0_120 = arith.constant 0 : index
      %c0_121 = arith.constant 0 : index
      %c16_122 = arith.constant 16 : index
      %137 = vector.load %arg17[%c0_120, %c0_121, %c16_122] : memref<2x8x32xf32, #tpu.memory_space<vmem>>, vector<2x8x8xf32>
      %c0_123 = arith.constant 0 : index
      %c0_124 = arith.constant 0 : index
      %c2_125 = arith.constant 2 : index
      %138 = vector.load %arg16[%c0_123, %c0_124, %c2_125] : memref<2x8x4xf32, #tpu.memory_space<vmem>>, vector<2x8x1xf32>
      %139 = vector.broadcast %138 : vector<2x8x1xf32> to vector<2x8x8xf32>
      %140 = arith.divf %137, %139 : vector<2x8x8xf32>
      %c0_126 = arith.constant 0 : index
      %c0_127 = arith.constant 0 : index
      %c16_128 = arith.constant 16 : index
      %141 = vector.load %arg17[%c0_126, %c0_127, %c16_128] : memref<2x8x32xf32, #tpu.memory_space<vmem>>, vector<2x8x8xf32>
      tpu.vector_store %arg17[%c0_126, %c0_127, %c16_128], %140 {strides = array<i32>} : memref<2x8x32xf32, #tpu.memory_space<vmem>>, vector<2x8x8xf32>,
      %c0_129 = arith.constant 0 : index
      %c0_130 = arith.constant 0 : index
      %c24_131 = arith.constant 24 : index
      %142 = vector.load %arg17[%c0_129, %c0_130, %c24_131] : memref<2x8x32xf32, #tpu.memory_space<vmem>>, vector<2x8x8xf32>
      %c0_132 = arith.constant 0 : index
      %c0_133 = arith.constant 0 : index
      %c3_134 = arith.constant 3 : index
      %143 = vector.load %arg16[%c0_132, %c0_133, %c3_134] : memref<2x8x4xf32, #tpu.memory_space<vmem>>, vector<2x8x1xf32>
      %144 = vector.broadcast %143 : vector<2x8x1xf32> to vector<2x8x8xf32>
      %145 = arith.divf %142, %144 : vector<2x8x8xf32>
      %c0_135 = arith.constant 0 : index
      %c0_136 = arith.constant 0 : index
      %c24_137 = arith.constant 24 : index
      %146 = vector.load %arg17[%c0_135, %c0_136, %c24_137] : memref<2x8x32xf32, #tpu.memory_space<vmem>>, vector<2x8x8xf32>
      tpu.vector_store %arg17[%c0_135, %c0_136, %c24_137], %145 {strides = array<i32>} : memref<2x8x32xf32, #tpu.memory_space<vmem>>, vector<2x8x8xf32>,
      %c0_138 = arith.constant 0 : index
      %c0_139 = arith.constant 0 : index
      %c0_140 = arith.constant 0 : index
      %147 = vector.load %arg17[%c0_138, %c0_139, %c0_140] : memref<2x8x32xf32, #tpu.memory_space<vmem>>, vector<2x8x32xf32>
      %148 = vector.shape_cast %147 : vector<2x8x32xf32> to vector<16x32xf32>
      %c0_141 = arith.constant 0 : index
      %c0_142 = arith.constant 0 : index
      %149 = vector.load %arg8[%c0_141, %c0_142] : memref<32x32xf32, #tpu.memory_space<vmem>>, vector<32x32xf32>
      %cst_143 = arith.constant dense<0.000000e+00> : vector<16x32xf32>
      %150 = tpu.matmul %148, %149, %cst_143 {dimension_numbers = #tpu.dot_dimension_numbers<[1], [0], [0], [1], [0, 0, 1, 1], [], []>} : vector<16x32xf32>, vector<32x32xf32>, vector<16x32xf32> -> vector<16x32xf32>
      %c0_144 = arith.constant 0 : index
      %c0_145 = arith.constant 0 : index
      %151 = vector.load %arg12[%c0_144, %c0_145] : memref<1x32xf32, #tpu.memory_space<vmem>>, vector<1x32xf32>
      %152 = vector.broadcast %151 : vector<1x32xf32> to vector<16x32xf32>
      %153 = arith.addf %150, %152 : vector<16x32xf32>
      %154 = vector.shape_cast %153 : vector<16x32xf32> to vector<2x8x32xf32>
      %c0_146 = arith.constant 0 : index
      %c0_147 = arith.constant 0 : index
      %c0_148 = arith.constant 0 : index
      %155 = vector.load %arg13[%c0_146, %c0_147, %c0_148] : memref<2x8x32xf32, #tpu.memory_space<vmem>>, vector<2x8x32xf32>
      tpu.vector_store %arg13[%c0_146, %c0_147, %c0_148], %154 {strides = array<i32>} : memref<2x8x32xf32, #tpu.memory_space<vmem>>, vector<2x8x32xf32>,
    } else {
    }
    return
  }
  func.func @transform_0(%arg0: i32, %arg1: i32) -> (i32, i32, i32) {
    %c0_i32 = arith.constant 0 : i32
    %c0_i32_0 = arith.constant 0 : i32
    %c0_i32_1 = arith.constant 0 : i32
    return %c0_i32, %arg0, %c0_i32_0 : i32, i32, i32
  }
  func.func @transform_1(%arg0: i32, %arg1: i32) -> (i32, i32, i32) {
    %c0_i32 = arith.constant 0 : i32
    %c0_i32_0 = arith.constant 0 : i32
    %c0_i32_1 = arith.constant 0 : i32
    return %c0_i32, %arg1, %c0_i32_0 : i32, i32, i32
  }
  func.func @transform_2(%arg0: i32, %arg1: i32) -> (i32, i32, i32) {
    %c0_i32 = arith.constant 0 : i32
    %c0_i32_0 = arith.constant 0 : i32
    %c0_i32_1 = arith.constant 0 : i32
    return %c0_i32, %arg1, %c0_i32_0 : i32, i32, i32
  }
  func.func @transform_3(%arg0: i32, %arg1: i32) -> (i32, i32) {
    %c0_i32 = arith.constant 0 : i32
    %c0_i32_0 = arith.constant 0 : i32
    %c0_i32_1 = arith.constant 0 : i32
    return %c0_i32, %c0_i32_0 : i32, i32
  }
  func.func @transform_4(%arg0: i32, %arg1: i32) -> (i32, i32) {
    %c0_i32 = arith.constant 0 : i32
    %c0_i32_0 = arith.constant 0 : i32
    %c0_i32_1 = arith.constant 0 : i32
    return %c0_i32, %c0_i32_0 : i32, i32
  }
  func.func @transform_5(%arg0: i32, %arg1: i32) -> (i32, i32) {
    %c0_i32 = arith.constant 0 : i32
    %c0_i32_0 = arith.constant 0 : i32
    %c0_i32_1 = arith.constant 0 : i32
    return %c0_i32, %c0_i32_0 : i32, i32
  }
  func.func @transform_6(%arg0: i32, %arg1: i32) -> (i32, i32) {
    %c0_i32 = arith.constant 0 : i32
    %c0_i32_0 = arith.constant 0 : i32
    %c0_i32_1 = arith.constant 0 : i32
    return %c0_i32, %c0_i32_0 : i32, i32
  }
  func.func @transform_7(%arg0: i32, %arg1: i32) -> (i32, i32) {
    %c0_i32 = arith.constant 0 : i32
    %c0_i32_0 = arith.constant 0 : i32
    %c0_i32_1 = arith.constant 0 : i32
    return %c0_i32, %c0_i32_0 : i32, i32
  }
  func.func @transform_8(%arg0: i32, %arg1: i32) -> (i32, i32) {
    %c0_i32 = arith.constant 0 : i32
    %c0_i32_0 = arith.constant 0 : i32
    %c0_i32_1 = arith.constant 0 : i32
    return %c0_i32, %c0_i32_0 : i32, i32
  }
  func.func @transform_9(%arg0: i32, %arg1: i32) -> (i32, i32) {
    %c0_i32 = arith.constant 0 : i32
    %c0_i32_0 = arith.constant 0 : i32
    %c0_i32_1 = arith.constant 0 : i32
    return %c0_i32, %c0_i32_0 : i32, i32
  }
  func.func @transform_10(%arg0: i32, %arg1: i32) -> (i32, i32) {
    %c0_i32 = arith.constant 0 : i32
    %c0_i32_0 = arith.constant 0 : i32
    %c0_i32_1 = arith.constant 0 : i32
    return %c0_i32, %c0_i32_0 : i32, i32
  }
  func.func @transform_11(%arg0: i32, %arg1: i32) -> (i32, i32, i32) {
    %c0_i32 = arith.constant 0 : i32
    %c0_i32_0 = arith.constant 0 : i32
    %c0_i32_1 = arith.constant 0 : i32
    return %c0_i32, %arg0, %c0_i32_0 : i32, i32, i32
  }
}

</mosaic_0001>

<llo_original>
// kernel: tpu_custom_call.1
$region0: #{tpu_custom_call.1}
  #allocation0 [shape = 'u32[]', space=smem, size = 0x4, offset = 0x4, fixed_abs, tag = 'smem constant byte address 0x4 - core index']
  #allocation1 [shape = 'u32[144,128]{1,0:T(1,128)}', space=vmem, size = 0x12000, scoped, tag = 'internal scratch']
  #allocation2 [shape = 'f32[2,8,32]{2,1,0:T(8,128)}', space=vmem, size = 0x2000, scoped, tag = 'scratch operand']
  #allocation3 [shape = 'f32[2,8,4]{2,1,0:T(8,128)}', space=vmem, size = 0x2000, scoped, tag = 'scratch operand']
  #allocation4 [shape = 'f32[2,8,4]{2,1,0:T(8,128)}', space=vmem, size = 0x2000, scoped, tag = 'scratch operand']
  #allocation5 [shape = 'f32[2,8,32]{2,1,0:T(8,128)}', space=vmem, size = 0x2000, scoped, tag = 'scratch operand']
  %s0 = inlined_call_operand.hbm [shape: f32[2,8,32], index: 0, kind: input, shape index: {}]
  %s1 = inlined_call_operand.hbm [shape: f32[2,8,32], index: 1, kind: input, shape index: {}]
  %s2 = inlined_call_operand.hbm [shape: f32[2,8,32], index: 2, kind: input, shape index: {}]
  %s3 = inlined_call_operand.hbm [shape: f32[32,32], index: 3, kind: input, shape index: {}]
  %s4 = inlined_call_operand.hbm [shape: f32[32,32], index: 4, kind: input, shape index: {}]
  %s5 = inlined_call_operand.hbm [shape: f32[32,32], index: 5, kind: input, shape index: {}]
  %s6 = inlined_call_operand.hbm [shape: f32[32,32], index: 6, kind: input, shape index: {}]
  %s7 = inlined_call_operand.hbm [shape: f32[1,32], index: 7, kind: input, shape index: {}]
  %s8 = inlined_call_operand.hbm [shape: f32[1,32], index: 8, kind: input, shape index: {}]
  %s9 = inlined_call_operand.hbm [shape: f32[1,32], index: 9, kind: input, shape index: {}]
  %s10 = inlined_call_operand.hbm [shape: f32[1,32], index: 10, kind: input, shape index: {}]
  %s11 = inlined_call_operand.hbm [shape: f32[2,8,32], index: 11, kind: output, shape index: {}]
  %s12 = sld [smem:[#allocation0]]
  $region106: #{tpu_custom_call.1} parent=0
    _
  %s14 = ssub.s32 1, %s12
  %s15 = scalar_select 0, %s14, %s12
  $region1: #{tpu_custom_call.1} parent=0
    #allocation6 [shape = 'u8[8192]{0}', space=vmem, size = 0x2000, scoped, tag = 'input window, operand 0, single buffered']
    #allocation7 [shape = 's32[1]{0}', space=sflag, size = 0x4, scoped, tag = 'scoped memory for tpu_custom_call.1']
    #allocation8 [shape = 's32[1]{0}', space=sflag, size = 0x4, scoped, tag = 'scoped memory for tpu_custom_call.1']
    #allocation9 [shape = 'u8[8192]{0}', space=vmem, size = 0x2000, scoped, tag = 'input window, operand 1, single buffered']
    #allocation10 [shape = 's32[1]{0}', space=sflag, size = 0x4, scoped, tag = 'scoped memory for tpu_custom_call.1']
    #allocation11 [shape = 'u8[8192]{0}', space=vmem, size = 0x2000, scoped, tag = 'input window, operand 2, single buffered']
    #allocation12 [shape = 'u8[16384]{0}', space=vmem, size = 0x4000, scoped, tag = 'input window, operand 3, single buffered']
    #allocation13 [shape = 's32[1]{0}', space=sflag, size = 0x4, scoped, tag = 'scoped memory for tpu_custom_call.1']
    #allocation14 [shape = 'u8[16384]{0}', space=vmem, size = 0x4000, scoped, tag = 'input window, operand 4, single buffered']
    #allocation15 [shape = 'u8[16384]{0}', space=vmem, size = 0x4000, scoped, tag = 'input window, operand 5, single buffered']
    #allocation16 [shape = 's32[1]{0}', space=sflag, size = 0x4, scoped, tag = 'scoped memory for tpu_custom_call.1']
    #allocation17 [shape = 'u8[16384]{0}', space=vmem, size = 0x4000, scoped, tag = 'input window, operand 6, single buffered']
    #allocation18 [shape = 'u8[512]{0}', space=vmem, size = 0x400, scoped, tag = 'input window, operand 7, single buffered']
    #allocation19 [shape = 's32[1]{0}', space=sflag, size = 0x4, scoped, tag = 'scoped memory for tpu_custom_call.1']
    #allocation20 [shape = 'u8[512]{0}', space=vmem, size = 0x400, scoped, tag = 'input window, operand 8, single buffered']
    #allocation21 [shape = 'u8[512]{0}', space=vmem, size = 0x400, scoped, tag = 'input window, operand 9, single buffered']
    #allocation22 [shape = 's32[1]{0}', space=sflag, size = 0x4, scoped, tag = 'scoped memory for tpu_custom_call.1']
    #allocation23 [shape = 'u8[512]{0}', space=vmem, size = 0x400, scoped, tag = 'input window, operand 10, single buffered']
    #allocation24 [shape = 'u8[8192]{0}', space=vmem, size = 0x2000, scoped, tag = 'output window, operand 0, single buffered']
    %16 = vsyncpa [#allocation7], 0
    %17 = vsyncpa [#allocation10], 0
    %18 = vsyncpa [#allocation13], 0
    %19 = vsyncpa [#allocation16], 0
    %20 = vsyncpa [#allocation19], 0
    %21 = vsyncpa [#allocation22], 0
    %22 = vsyncpa [#allocation8], 0
    // Predicated region
    $region2: #{tpu_custom_call.1} parent=1 // pred_check
      _
    $region3: #{tpu_custom_call.1} parent=1 // pred_check_branch
      %24 = sbr.rel (0) target = $region5
    $region4: #{tpu_custom_call.1} parent=1 // pred_region
      %s26 = ssub.s32 256, 256
      %27 = vsyncadd [#allocation7], %s26
      %s28 = sshll.u32 [#allocation6], 4
      %s29 = int_to_ptr.vmem [resolvable:$true] %s28
      %34 = dma.hbm_to_vmem [thread:$0]  %s0, 256, %s29, [#allocation7], 128, 128, 8
    $region5: #{tpu_custom_call.1} parent=1 // pred_fallthru
      _
    // Predicated region
    $region6: #{tpu_custom_call.1} parent=1 // pred_check
      _
    $region7: #{tpu_custom_call.1} parent=1 // pred_check_branch
      %36 = sbr.rel (0) target = $region9
    $region8: #{tpu_custom_call.1} parent=1 // pred_region
      %s38 = ssub.s32 256, 256
      %39 = vsyncadd [#allocation10], %s38
      %s40 = sshll.u32 [#allocation9], 4
      %s41 = int_to_ptr.vmem [resolvable:$true] %s40
      %46 = dma.hbm_to_vmem [thread:$0]  %s1, 256, %s41, [#allocation10], 128, 128, 8
    $region9: #{tpu_custom_call.1} parent=1 // pred_fallthru
      _
    // Predicated region
    $region10: #{tpu_custom_call.1} parent=1 // pred_check
      _
    $region11: #{tpu_custom_call.1} parent=1 // pred_check_branch
      %48 = sbr.rel (0) target = $region13
    $region12: #{tpu_custom_call.1} parent=1 // pred_region
      %s50 = ssub.s32 256, 256
      %51 = vsyncadd [#allocation10], %s50
      %s52 = sshll.u32 [#allocation11], 4
      %s53 = int_to_ptr.vmem [resolvable:$true] %s52
      %58 = dma.hbm_to_vmem [thread:$0]  %s2, 256, %s53, [#allocation10], 128, 128, 8
    $region13: #{tpu_custom_call.1} parent=1 // pred_fallthru
      _
    // Predicated region
    $region14: #{tpu_custom_call.1} parent=1 // pred_check
      _
    $region15: #{tpu_custom_call.1} parent=1 // pred_check_branch
      %60 = sbr.rel (0) target = $region17
    $region16: #{tpu_custom_call.1} parent=1 // pred_region
      %s62 = ssub.s32 512, 512
      %63 = vsyncadd [#allocation13], %s62
      %s64 = sshll.u32 [#allocation12], 4
      %s65 = int_to_ptr.vmem [resolvable:$true] %s64
      %70 = dma.hbm_to_vmem [thread:$0]  %s3, 512, %s65, [#allocation13], 128, 128, 8
    $region17: #{tpu_custom_call.1} parent=1 // pred_fallthru
      _
    // Predicated region
    $region18: #{tpu_custom_call.1} parent=1 // pred_check
      _
    $region19: #{tpu_custom_call.1} parent=1 // pred_check_branch
      %72 = sbr.rel (0) target = $region21
    $region20: #{tpu_custom_call.1} parent=1 // pred_region
      %s74 = ssub.s32 512, 512
      %75 = vsyncadd [#allocation13], %s74
      %s76 = sshll.u32 [#allocation14], 4
      %s77 = int_to_ptr.vmem [resolvable:$true] %s76
      %82 = dma.hbm_to_vmem [thread:$0]  %s4, 512, %s77, [#allocation13], 128, 128, 8
    $region21: #{tpu_custom_call.1} parent=1 // pred_fallthru
      _
    // Predicated region
    $region22: #{tpu_custom_call.1} parent=1 // pred_check
      _
    $region23: #{tpu_custom_call.1} parent=1 // pred_check_branch
      %84 = sbr.rel (0) target = $region25
    $region24: #{tpu_custom_call.1} parent=1 // pred_region
      %s86 = ssub.s32 512, 512
      %87 = vsyncadd [#allocation16], %s86
      %s88 = sshll.u32 [#allocation15], 4
      %s89 = int_to_ptr.vmem [resolvable:$true] %s88
      %94 = dma.hbm_to_vmem [thread:$0]  %s5, 512, %s89, [#allocation16], 128, 128, 8
    $region25: #{tpu_custom_call.1} parent=1 // pred_fallthru
      _
    // Predicated region
    $region26: #{tpu_custom_call.1} parent=1 // pred_check
      _
    $region27: #{tpu_custom_call.1} parent=1 // pred_check_branch
      %96 = sbr.rel (0) target = $region29
    $region28: #{tpu_custom_call.1} parent=1 // pred_region
      %s98 = ssub.s32 512, 512
      %99 = vsyncadd [#allocation16], %s98
      %s100 = sshll.u32 [#allocation17], 4
      %s101 = int_to_ptr.vmem [resolvable:$true] %s100
      %106 = dma.hbm_to_vmem [thread:$0]  %s6, 512, %s101, [#allocation16], 128, 128, 8
    $region29: #{tpu_custom_call.1} parent=1 // pred_fallthru
      _
    // Predicated region
    $region30: #{tpu_custom_call.1} parent=1 // pred_check
      _
    $region31: #{tpu_custom_call.1} parent=1 // pred_check_branch
      %108 = sbr.rel (0) target = $region33
    $region32: #{tpu_custom_call.1} parent=1 // pred_region
      %s110 = ssub.s32 16, 16
      %111 = vsyncadd [#allocation19], %s110
      %s113 = sshll.u32 [#allocation18], 4
      %s114 = int_to_ptr.vmem [resolvable:$true] %s113
      %116 = dma.hbm_to_vmem [thread:$0]  %s7, 16, %s114, [#allocation19]
    $region33: #{tpu_custom_call.1} parent=1 // pred_fallthru
      _
    // Predicated region
    $region34: #{tpu_custom_call.1} parent=1 // pred_check
      _
    $region35: #{tpu_custom_call.1} parent=1 // pred_check_branch
      %118 = sbr.rel (0) target = $region37
    $region36: #{tpu_custom_call.1} parent=1 // pred_region
      %s120 = ssub.s32 16, 16
      %121 = vsyncadd [#allocation19], %s120
      %s123 = sshll.u32 [#allocation20], 4
      %s124 = int_to_ptr.vmem [resolvable:$true] %s123
      %126 = dma.hbm_to_vmem [thread:$0]  %s8, 16, %s124, [#allocation19]
    $region37: #{tpu_custom_call.1} parent=1 // pred_fallthru
      _
    // Predicated region
    $region38: #{tpu_custom_call.1} parent=1 // pred_check
      _
    $region39: #{tpu_custom_call.1} parent=1 // pred_check_branch
      %128 = sbr.rel (0) target = $region41
    $region40: #{tpu_custom_call.1} parent=1 // pred_region
      %s130 = ssub.s32 16, 16
      %131 = vsyncadd [#allocation22], %s130
      %s133 = sshll.u32 [#allocation21], 4
      %s134 = int_to_ptr.vmem [resolvable:$true] %s133
      %136 = dma.hbm_to_vmem [thread:$0]  %s9, 16, %s134, [#allocation22]
    $region41: #{tpu_custom_call.1} parent=1 // pred_fallthru
      _
    // Predicated region
    $region42: #{tpu_custom_call.1} parent=1 // pred_check
      _
    $region43: #{tpu_custom_call.1} parent=1 // pred_check_branch
      %138 = sbr.rel (0) target = $region45
    $region44: #{tpu_custom_call.1} parent=1 // pred_region
      %s140 = ssub.s32 16, 16
      %141 = vsyncadd [#allocation22], %s140
      %s143 = sshll.u32 [#allocation23], 4
      %s144 = int_to_ptr.vmem [resolvable:$true] %s143
      %146 = dma.hbm_to_vmem [thread:$0]  %s10, 16, %s144, [#allocation22]
    $region45: #{tpu_custom_call.1} parent=1 // pred_fallthru
      _
    // Predicated region
    $region46: #{tpu_custom_call.1} parent=1 // pred_check
      _
    $region47: #{tpu_custom_call.1} parent=1 // pred_check_branch
      %148 = sbr.rel (0) target = $region49
    $region48: #{tpu_custom_call.1} parent=1 // pred_region
      %149 = dma.done [#allocation7], 256
    $region49: #{tpu_custom_call.1} parent=1 // pred_fallthru
      _
    // Predicated region
    $region50: #{tpu_custom_call.1} parent=1 // pred_check
      _
    $region51: #{tpu_custom_call.1} parent=1 // pred_check_branch
      %151 = sbr.rel (0) target = $region53
    $region52: #{tpu_custom_call.1} parent=1 // pred_region
      %152 = dma.done [#allocation10], 256
    $region53: #{tpu_custom_call.1} parent=1 // pred_fallthru
      _
    // Predicated region
    $region54: #{tpu_custom_call.1} parent=1 // pred_check
      _
    $region55: #{tpu_custom_call.1} parent=1 // pred_check_branch
      %154 = sbr.rel (0) target = $region57
    $region56: #{tpu_custom_call.1} parent=1 // pred_region
      %155 = dma.done [#allocation10], 256
    $region57: #{tpu_custom_call.1} parent=1 // pred_fallthru
      _
    // Predicated region
    $region58: #{tpu_custom_call.1} parent=1 // pred_check
      _
    $region59: #{tpu_custom_call.1} parent=1 // pred_check_branch
      %157 = sbr.rel (0) target = $region61
    $region60: #{tpu_custom_call.1} parent=1 // pred_region
      %158 = dma.done [#allocation13], 512
    $region61: #{tpu_custom_call.1} parent=1 // pred_fallthru
      _
    // Predicated region
    $region62: #{tpu_custom_call.1} parent=1 // pred_check
      _
    $region63: #{tpu_custom_call.1} parent=1 // pred_check_branch
      %160 = sbr.rel (0) target = $region65
    $region64: #{tpu_custom_call.1} parent=1 // pred_region
      %161 = dma.done [#allocation13], 512
    $region65: #{tpu_custom_call.1} parent=1 // pred_fallthru
      _
    // Predicated region
    $region66: #{tpu_custom_call.1} parent=1 // pred_check
      _
    $region67: #{tpu_custom_call.1} parent=1 // pred_check_branch
      %163 = sbr.rel (0) target = $region69
    $region68: #{tpu_custom_call.1} parent=1 // pred_region
      %164 = dma.done [#allocation16], 512
    $region69: #{tpu_custom_call.1} parent=1 // pred_fallthru
      _
    // Predicated region
    $region70: #{tpu_custom_call.1} parent=1 // pred_check
      _
    $region71: #{tpu_custom_call.1} parent=1 // pred_check_branch
      %166 = sbr.rel (0) target = $region73
    $region72: #{tpu_custom_call.1} parent=1 // pred_region
      %167 = dma.done [#allocation16], 512
    $region73: #{tpu_custom_call.1} parent=1 // pred_fallthru
      _
    // Predicated region
    $region74: #{tpu_custom_call.1} parent=1 // pred_check
      _
    $region75: #{tpu_custom_call.1} parent=1 // pred_check_branch
      %169 = sbr.rel (0) target = $region77
    $region76: #{tpu_custom_call.1} parent=1 // pred_region
      %170 = dma.done [#allocation19], 16
    $region77: #{tpu_custom_call.1} parent=1 // pred_fallthru
      _
    // Predicated region
    $region78: #{tpu_custom_call.1} parent=1 // pred_check
      _
    $region79: #{tpu_custom_call.1} parent=1 // pred_check_branch
      %172 = sbr.rel (0) target = $region81
    $region80: #{tpu_custom_call.1} parent=1 // pred_region
      %173 = dma.done [#allocation19], 16
    $region81: #{tpu_custom_call.1} parent=1 // pred_fallthru
      _
    // Predicated region
    $region82: #{tpu_custom_call.1} parent=1 // pred_check
      _
    $region83: #{tpu_custom_call.1} parent=1 // pred_check_branch
      %175 = sbr.rel (0) target = $region85
    $region84: #{tpu_custom_call.1} parent=1 // pred_region
      %176 = dma.done [#allocation22], 16
    $region85: #{tpu_custom_call.1} parent=1 // pred_fallthru
      _
    // Predicated region
    $region86: #{tpu_custom_call.1} parent=1 // pred_check
      _
    $region87: #{tpu_custom_call.1} parent=1 // pred_check_branch
      %178 = sbr.rel (0) target = $region89
    $region88: #{tpu_custom_call.1} parent=1 // pred_region
      %179 = dma.done [#allocation22], 16
    $region89: #{tpu_custom_call.1} parent=1 // pred_fallthru
      _
    %p180 = scmp.eq.s32.totalorder 0, 0
    // Predicated region
    $region90: #{tpu_custom_call.1} parent=1 // pred_check
      %p181 = pneg %p180
    $region91: #{tpu_custom_call.1} parent=1 // pred_check_branch
      %183 = sbr.rel (%p181) target = $region93
    $region92: #{tpu_custom_call.1} parent=1 // pred_region
      %v184 = vld [vmem:[#allocation6] sm:$0xff]
      %v185 = vld [vmem:[#allocation6 + $0x8] sm:$0xff]
      %v186 = vld [vmem:[#allocation12] sm:$0xff]
      %v187 = vld [vmem:[#allocation12 + $0x8] sm:$0xff]
      %v188 = vld [vmem:[#allocation12 + $0x10] sm:$0xff]
      %v189 = vld [vmem:[#allocation12 + $0x18] sm:$0xff]
      %v190 = vld [vmem:[#allocation18] sm:$0x1]
      %v192 = vlaneseq
      %v193 = vshrl.u32 %v192, 7
      %v194 = vsub.s32 0, %v193
      %v195 = vrot.slane %v190, %v194
      %vm197 = vcmask 261120
      %v199 = vsel %vm197, %v184, 0
      %v202 = vsel %vm197, %v185, 0
      %204 = vmatprep.subr.mxu0 0.0
      %205 = vmatpush1.msra.mxu0 %v186
      %206 = vmatprep.subr.mxu0 0.0
      %207 = vmatpush1.msra.mxu0 %v187
      %208 = vmatprep.subr.mxu0 0.0
      %209 = vmatpush1.msra.mxu0 %v188
      %210 = vmatprep.subr.mxu0 0.0
      %211 = vmatpush1.msra.mxu0 %v189
      %212 = vmatprep.subr.mxu0 0.0
      %213 = vmatpush1.msra.mxu0 0.0
      %214 = vmatprep.subr.mxu0 0.0
      %215 = vmatpush1.msra.mxu0 0.0
      %216 = vmatprep.subr.mxu0 0.0
      %217 = vmatpush1.msra.mxu0 0.0
      %218 = vmatprep.subr.mxu0 0.0
      %219 = vmatpush1.msra.mxu0 0.0
      %220 = vmatprep.subr.mxu0 0.0
      %221 = vmatpush1.msra.mxu0 0.0
      %222 = vmatprep.subr.mxu0 0.0
      %223 = vmatpush1.msra.mxu0 0.0
      %224 = vmatprep.subr.mxu0 0.0
      %225 = vmatpush1.msra.mxu0 0.0
      %226 = vmatprep.subr.mxu0 0.0
      %227 = vmatpush1.msra.mxu0 0.0
      %228 = vmatprep.subr.mxu0 0.0
      %229 = vmatpush1.msra.mxu0 0.0
      %230 = vmatprep.subr.mxu0 0.0
      %231 = vmatpush1.msra.mxu0 0.0
      %232 = vmatprep.subr.mxu0 0.0
      %233 = vmatpush1.msra.mxu0 0.0
      %234 = vmatprep.subr.mxu0 0.0
      %235 = vmatpush1.msra.mxu0 0.0
      %236 = vmatprep.subr.mxu0 0.0
      %237 = vmatpush1.msra.mxu0 0.0
      %238 = vmatprep.subr.mxu0 0.0
      %239 = vmatpush1.msra.mxu0 0.0
      %240 = vmatprep.subr.mxu0 0.0
      %241 = vmatpush1.msra.mxu0 0.0
      %242 = vmatprep.subr.mxu0 0.0
      %243 = vmatpush1.msra.mxu0 0.0
      %244 = vmatprep.subr.mxu0 0.0
      %245 = vmatpush1.msra.mxu0 0.0
      %246 = vmatprep.subr.mxu0 0.0
      %247 = vmatpush1.msra.mxu0 0.0
      %248 = vmatprep.subr.mxu0 0.0
      %249 = vmatpush1.msra.mxu0 0.0
      %250 = vmatprep.subr.mxu0 0.0
      %251 = vmatpush1.msra.mxu0 0.0
      %252 = vmatprep.subr.mxu0 0.0
      %253 = vmatpush1.msra.mxu0 0.0
      %254 = vmatprep.subr.mxu0 0.0
      %255 = vmatpush1.msra.mxu0 0.0
      %256 = vmatprep.subr.mxu0 0.0
      %257 = vmatpush1.msra.mxu0 0.0
      %258 = vmatprep.subr.mxu0 0.0
      %259 = vmatpush1.msra.mxu0 0.0
      %260 = vmatprep.subr.mxu0 0.0
      %261 = vmatpush1.msra.mxu0 0.0
      %262 = vmatprep.subr.mxu0 0.0
      %263 = vmatpush1.msra.mxu0 0.0
      %264 = vmatprep.subr.mxu0 0.0
      %265 = vmatpush1.msra.mxu0 0.0
      %266 = vmatprep.subr.mxu0 0.0
      %267 = vmatpush1.msra.mxu0 0.0
      %268 = vmatprep.mubr.f32.mxu0 0.0
      %269 = vmatmul.mubr.f32.gmra.mrb[0].mxu0 %v199
      %v270 = vpop.f32.mrb[0].mxu0
      %v271 = vadd.f32 %v195, %v270
      %v272 = vpop.f32.mrb[0].mxu0
      %273 = vmatprep.mubr.f32.mxu0 0.0
      %274 = vmatmul.mubr.f32.gmra.mrb[0].mxu0 %v202
      %v275 = vpop.f32.mrb[0].mxu0
      %v276 = vadd.f32 %v195, %v275
      %v277 = vpop.f32.mrb[0].mxu0
      %278 = vdwg.mxu0
      %v279 = vmul.f32 %v271, 0.35355338
      %v280 = vmul.f32 %v276, 0.35355338
      %281 = vst.msk [vmem:[#allocation2] sm:$0xff] %vm197, %v279
      %282 = vst.msk [vmem:[#allocation2 + $0x8] sm:$0xff] %vm197, %v280
      %vm283 = vcmask 31744
      %284 = vst.msk [vmem:[#allocation3] sm:$0xff] %vm283, -inf
      %285 = vst.msk [vmem:[#allocation3 + $0x8] sm:$0xff] %vm283, -inf
      %286 = vst.msk [vmem:[#allocation4] sm:$0xff] %vm283, 0.0
      %287 = vst.msk [vmem:[#allocation4 + $0x8] sm:$0xff] %vm283, 0.0
      %288 = vst.msk [vmem:[#allocation5] sm:$0xff] %vm197, 0.0
      %289 = vst.msk [vmem:[#allocation5 + $0x8] sm:$0xff] %vm197, 0.0
    $region93: #{tpu_custom_call.1} parent=1 // pred_fallthru
      _
    %v290 = vld [vmem:[#allocation9] sm:$0xff]
    %v291 = vld [vmem:[#allocation9 + $0x8] sm:$0xff]
    %v292 = vld [vmem:[#allocation14] sm:$0xff]
    %v293 = vld [vmem:[#allocation14 + $0x8] sm:$0xff]
    %v294 = vld [vmem:[#allocation14 + $0x10] sm:$0xff]
    %v295 = vld [vmem:[#allocation14 + $0x18] sm:$0xff]
    %v296 = vld [vmem:[#allocation20] sm:$0x1]
    %v298 = vlaneseq
    %v299 = vshrl.u32 %v298, 7
    %v300 = vsub.s32 0, %v299
    %v301 = vrot.slane %v296, %v300
    %vm303 = vcmask 261120
    %v305 = vsel %vm303, %v290, 0
    %v308 = vsel %vm303, %v291, 0
    %310 = vmatprep.subr.mxu0 0.0
    %311 = vmatpush1.msra.mxu0 %v292
    %312 = vmatprep.subr.mxu0 0.0
    %313 = vmatpush1.msra.mxu0 %v293
    %314 = vmatprep.subr.mxu0 0.0
    %315 = vmatpush1.msra.mxu0 %v294
    %316 = vmatprep.subr.mxu0 0.0
    %317 = vmatpush1.msra.mxu0 %v295
    %318 = vmatprep.subr.mxu0 0.0
    %319 = vmatpush1.msra.mxu0 0.0
    %320 = vmatprep.subr.mxu0 0.0
    %321 = vmatpush1.msra.mxu0 0.0
    %322 = vmatprep.subr.mxu0 0.0
    %323 = vmatpush1.msra.mxu0 0.0
    %324 = vmatprep.subr.mxu0 0.0
    %325 = vmatpush1.msra.mxu0 0.0
    %326 = vmatprep.subr.mxu0 0.0
    %327 = vmatpush1.msra.mxu0 0.0
    %328 = vmatprep.subr.mxu0 0.0
    %329 = vmatpush1.msra.mxu0 0.0
    %330 = vmatprep.subr.mxu0 0.0
    %331 = vmatpush1.msra.mxu0 0.0
    %332 = vmatprep.subr.mxu0 0.0
    %333 = vmatpush1.msra.mxu0 0.0
    %334 = vmatprep.subr.mxu0 0.0
    %335 = vmatpush1.msra.mxu0 0.0
    %336 = vmatprep.subr.mxu0 0.0
    %337 = vmatpush1.msra.mxu0 0.0
    %338 = vmatprep.subr.mxu0 0.0
    %339 = vmatpush1.msra.mxu0 0.0
    %340 = vmatprep.subr.mxu0 0.0
    %341 = vmatpush1.msra.mxu0 0.0
    %342 = vmatprep.subr.mxu0 0.0
    %343 = vmatpush1.msra.mxu0 0.0
    %344 = vmatprep.subr.mxu0 0.0
    %345 = vmatpush1.msra.mxu0 0.0
    %346 = vmatprep.subr.mxu0 0.0
    %347 = vmatpush1.msra.mxu0 0.0
    %348 = vmatprep.subr.mxu0 0.0
    %349 = vmatpush1.msra.mxu0 0.0
    %350 = vmatprep.subr.mxu0 0.0
    %351 = vmatpush1.msra.mxu0 0.0
    %352 = vmatprep.subr.mxu0 0.0
    %353 = vmatpush1.msra.mxu0 0.0
    %354 = vmatprep.subr.mxu0 0.0
    %355 = vmatpush1.msra.mxu0 0.0
    %356 = vmatprep.subr.mxu0 0.0
    %357 = vmatpush1.msra.mxu0 0.0
    %358 = vmatprep.subr.mxu0 0.0
    %359 = vmatpush1.msra.mxu0 0.0
    %360 = vmatprep.subr.mxu0 0.0
    %361 = vmatpush1.msra.mxu0 0.0
    %362 = vmatprep.subr.mxu0 0.0
    %363 = vmatpush1.msra.mxu0 0.0
    %364 = vmatprep.subr.mxu0 0.0
    %365 = vmatpush1.msra.mxu0 0.0
    %366 = vmatprep.subr.mxu0 0.0
    %367 = vmatpush1.msra.mxu0 0.0
    %368 = vmatprep.subr.mxu0 0.0
    %369 = vmatpush1.msra.mxu0 0.0
    %370 = vmatprep.subr.mxu0 0.0
    %371 = vmatpush1.msra.mxu0 0.0
    %372 = vmatprep.subr.mxu0 0.0
    %373 = vmatpush1.msra.mxu0 0.0
    %374 = vmatprep.mubr.f32.mxu0 0.0
    %375 = vmatmul.mubr.f32.gmra.mrb[0].mxu0 %v305
    %v376 = vpop.f32.mrb[0].mxu0
    %v377 = vadd.f32 %v301, %v376
    %v378 = vpop.f32.mrb[0].mxu0
    %379 = vmatprep.mubr.f32.mxu0 0.0
    %380 = vmatmul.mubr.f32.gmra.mrb[0].mxu0 %v308
    %v381 = vpop.f32.mrb[0].mxu0
    %v382 = vadd.f32 %v301, %v381
    %v383 = vpop.f32.mrb[0].mxu0
    %384 = vdwg.mxu0
    %v385 = vld [vmem:[#allocation11] sm:$0xff]
    %v386 = vld [vmem:[#allocation11 + $0x8] sm:$0xff]
    %v387 = vld [vmem:[#allocation15] sm:$0xff]
    %v388 = vld [vmem:[#allocation15 + $0x8] sm:$0xff]
    %v389 = vld [vmem:[#allocation15 + $0x10] sm:$0xff]
    %v390 = vld [vmem:[#allocation15 + $0x18] sm:$0xff]
    %v391 = vld [vmem:[#allocation21] sm:$0x1]
    %v393 = vlaneseq
    %v394 = vshrl.u32 %v393, 7
    %v395 = vsub.s32 0, %v394
    %v396 = vrot.slane %v391, %v395
    %v399 = vsel %vm303, %v385, 0
    %v402 = vsel %vm303, %v386, 0
    %404 = vmatprep.subr.mxu0 0.0
    %405 = vmatpush1.msra.mxu0 %v387
    %406 = vmatprep.subr.mxu0 0.0
    %407 = vmatpush1.msra.mxu0 %v388
    %408 = vmatprep.subr.mxu0 0.0
    %409 = vmatpush1.msra.mxu0 %v389
    %410 = vmatprep.subr.mxu0 0.0
    %411 = vmatpush1.msra.mxu0 %v390
    %412 = vmatprep.subr.mxu0 0.0
    %413 = vmatpush1.msra.mxu0 0.0
    %414 = vmatprep.subr.mxu0 0.0
    %415 = vmatpush1.msra.mxu0 0.0
    %416 = vmatprep.subr.mxu0 0.0
    %417 = vmatpush1.msra.mxu0 0.0
    %418 = vmatprep.subr.mxu0 0.0
    %419 = vmatpush1.msra.mxu0 0.0
    %420 = vmatprep.subr.mxu0 0.0
    %421 = vmatpush1.msra.mxu0 0.0
    %422 = vmatprep.subr.mxu0 0.0
    %423 = vmatpush1.msra.mxu0 0.0
    %424 = vmatprep.subr.mxu0 0.0
    %425 = vmatpush1.msra.mxu0 0.0
    %426 = vmatprep.subr.mxu0 0.0
    %427 = vmatpush1.msra.mxu0 0.0
    %428 = vmatprep.subr.mxu0 0.0
    %429 = vmatpush1.msra.mxu0 0.0
    %430 = vmatprep.subr.mxu0 0.0
    %431 = vmatpush1.msra.mxu0 0.0
    %432 = vmatprep.subr.mxu0 0.0
    %433 = vmatpush1.msra.mxu0 0.0
    %434 = vmatprep.subr.mxu0 0.0
    %435 = vmatpush1.msra.mxu0 0.0
    %436 = vmatprep.subr.mxu0 0.0
    %437 = vmatpush1.msra.mxu0 0.0
    %438 = vmatprep.subr.mxu0 0.0
    %439 = vmatpush1.msra.mxu0 0.0
    %440 = vmatprep.subr.mxu0 0.0
    %441 = vmatpush1.msra.mxu0 0.0
    %442 = vmatprep.subr.mxu0 0.0
    %443 = vmatpush1.msra.mxu0 0.0
    %444 = vmatprep.subr.mxu0 0.0
    %445 = vmatpush1.msra.mxu0 0.0
    %446 = vmatprep.subr.mxu0 0.0
    %447 = vmatpush1.msra.mxu0 0.0
    %448 = vmatprep.subr.mxu0 0.0
    %449 = vmatpush1.msra.mxu0 0.0
    %450 = vmatprep.subr.mxu0 0.0
    %451 = vmatpush1.msra.mxu0 0.0
    %452 = vmatprep.subr.mxu0 0.0
    %453 = vmatpush1.msra.mxu0 0.0
    %454 = vmatprep.subr.mxu0 0.0
    %455 = vmatpush1.msra.mxu0 0.0
    %456 = vmatprep.subr.mxu0 0.0
    %457 = vmatpush1.msra.mxu0 0.0
    %458 = vmatprep.subr.mxu0 0.0
    %459 = vmatpush1.msra.mxu0 0.0
    %460 = vmatprep.subr.mxu0 0.0
    %461 = vmatpush1.msra.mxu0 0.0
    %462 = vmatprep.subr.mxu0 0.0
    %463 = vmatpush1.msra.mxu0 0.0
    %464 = vmatprep.subr.mxu0 0.0
    %465 = vmatpush1.msra.mxu0 0.0
    %466 = vmatprep.subr.mxu0 0.0
    %467 = vmatpush1.msra.mxu0 0.0
    %468 = vmatprep.mubr.f32.mxu0 0.0
    %469 = vmatmul.mubr.f32.gmra.mrb[0].mxu0 %v399
    %v470 = vpop.f32.mrb[0].mxu0
    %v471 = vadd.f32 %v396, %v470
    %v472 = vpop.f32.mrb[0].mxu0
    %473 = vmatprep.mubr.f32.mxu0 0.0
    %474 = vmatmul.mubr.f32.gmra.mrb[0].mxu0 %v402
    %v475 = vpop.f32.mrb[0].mxu0
    %v476 = vadd.f32 %v396, %v475
    %v477 = vpop.f32.mrb[0].mxu0
    %478 = vdwg.mxu0
    %v479 = vld [vmem:[#allocation2] sm:$0xff]
    %v480 = vld [vmem:[#allocation2 + $0x8] sm:$0xff]
    %vm481 = vcmask 64512
    %v483 = vsel %vm481, %v479, 0
    %v486 = vsel %vm481, %v377, 0
    %488 = vmatprep.subr.mxu0 0.0
    %489 = vmatpush1.xpose.msra.mxu0 %v486
    %490 = vmatprep.subr.mxu0 0.0
    %491 = vmatpush1.xpose.msra.mxu0 0.0
    %492 = vmatprep.subr.mxu0 0.0
    %493 = vmatpush1.xpose.msra.mxu0 0.0
    %494 = vmatprep.subr.mxu0 0.0
    %495 = vmatpush1.xpose.msra.mxu0 0.0
    %496 = vmatprep.subr.mxu0 0.0
    %497 = vmatpush1.xpose.msra.mxu0 0.0
    %498 = vmatprep.subr.mxu0 0.0
    %499 = vmatpush1.xpose.msra.mxu0 0.0
    %500 = vmatprep.subr.mxu0 0.0
    %501 = vmatpush1.xpose.msra.mxu0 0.0
    %502 = vmatprep.subr.mxu0 0.0
    %503 = vmatpush1.xpose.msra.mxu0 0.0
    %504 = vmatprep.subr.mxu0 0.0
    %505 = vmatpush1.xpose.msra.mxu0 0.0
    %506 = vmatprep.subr.mxu0 0.0
    %507 = vmatpush1.xpose.msra.mxu0 0.0
    %508 = vmatprep.subr.mxu0 0.0
    %509 = vmatpush1.xpose.msra.mxu0 0.0
    %510 = vmatprep.subr.mxu0 0.0
    %511 = vmatpush1.xpose.msra.mxu0 0.0
    %512 = vmatprep.subr.mxu0 0.0
    %513 = vmatpush1.xpose.msra.mxu0 0.0
    %514 = vmatprep.subr.mxu0 0.0
    %515 = vmatpush1.xpose.msra.mxu0 0.0
    %516 = vmatprep.subr.mxu0 0.0
    %517 = vmatpush1.xpose.msra.mxu0 0.0
    %518 = vmatprep.subr.mxu0 0.0
    %519 = vmatpush1.xpose.msra.mxu0 0.0
    %520 = vmatprep.subr.mxu0 0.0
    %521 = vmatpush1.xpose.msra.mxu0 0.0
    %522 = vmatprep.subr.mxu0 0.0
    %523 = vmatpush1.xpose.msra.mxu0 0.0
    %524 = vmatprep.subr.mxu0 0.0
    %525 = vmatpush1.xpose.msra.mxu0 0.0
    %526 = vmatprep.subr.mxu0 0.0
    %527 = vmatpush1.xpose.msra.mxu0 0.0
    %528 = vmatprep.subr.mxu0 0.0
    %529 = vmatpush1.xpose.msra.mxu0 0.0
    %530 = vmatprep.subr.mxu0 0.0
    %531 = vmatpush1.xpose.msra.mxu0 0.0
    %532 = vmatprep.subr.mxu0 0.0
    %533 = vmatpush1.xpose.msra.mxu0 0.0
    %534 = vmatprep.subr.mxu0 0.0
    %535 = vmatpush1.xpose.msra.mxu0 0.0
    %536 = vmatprep.subr.mxu0 0.0
    %537 = vmatpush1.xpose.msra.mxu0 0.0
    %538 = vmatprep.subr.mxu0 0.0
    %539 = vmatpush1.xpose.msra.mxu0 0.0
    %540 = vmatprep.subr.mxu0 0.0
    %541 = vmatpush1.xpose.msra.mxu0 0.0
    %542 = vmatprep.subr.mxu0 0.0
    %543 = vmatpush1.xpose.msra.mxu0 0.0
    %544 = vmatprep.subr.mxu0 0.0
    %545 = vmatpush1.xpose.msra.mxu0 0.0
    %546 = vmatprep.subr.mxu0 0.0
    %547 = vmatpush1.xpose.msra.mxu0 0.0
    %548 = vmatprep.subr.mxu0 0.0
    %549 = vmatpush1.xpose.msra.mxu0 0.0
    %550 = vmatprep.subr.mxu0 0.0
    %551 = vmatpush1.xpose.msra.mxu0 0.0
    %552 = vmatprep.mubr.f32.mxu0 0.0
    %553 = vmatmul.mubr.f32.gmra.mrb[0].mxu0 %v483
    %v554 = vpop.f32.mrb[0].mxu0
    %v555 = vadd.f32 0.0, %v554
    %v556 = vpop.f32.mrb[0].mxu0
    %557 = vdwg.mxu0
    %v559 = vsel %vm481, %v480, 0
    %v562 = vsel %vm481, %v382, 0
    %564 = vmatprep.subr.mxu0 0.0
    %565 = vmatpush1.xpose.msra.mxu0 %v562
    %566 = vmatprep.subr.mxu0 0.0
    %567 = vmatpush1.xpose.msra.mxu0 0.0
    %568 = vmatprep.subr.mxu0 0.0
    %569 = vmatpush1.xpose.msra.mxu0 0.0
    %570 = vmatprep.subr.mxu0 0.0
    %571 = vmatpush1.xpose.msra.mxu0 0.0
    %572 = vmatprep.subr.mxu0 0.0
    %573 = vmatpush1.xpose.msra.mxu0 0.0
    %574 = vmatprep.subr.mxu0 0.0
    %575 = vmatpush1.xpose.msra.mxu0 0.0
    %576 = vmatprep.subr.mxu0 0.0
    %577 = vmatpush1.xpose.msra.mxu0 0.0
    %578 = vmatprep.subr.mxu0 0.0
    %579 = vmatpush1.xpose.msra.mxu0 0.0
    %580 = vmatprep.subr.mxu0 0.0
    %581 = vmatpush1.xpose.msra.mxu0 0.0
    %582 = vmatprep.subr.mxu0 0.0
    %583 = vmatpush1.xpose.msra.mxu0 0.0
    %584 = vmatprep.subr.mxu0 0.0
    %585 = vmatpush1.xpose.msra.mxu0 0.0
    %586 = vmatprep.subr.mxu0 0.0
    %587 = vmatpush1.xpose.msra.mxu0 0.0
    %588 = vmatprep.subr.mxu0 0.0
    %589 = vmatpush1.xpose.msra.mxu0 0.0
    %590 = vmatprep.subr.mxu0 0.0
    %591 = vmatpush1.xpose.msra.mxu0 0.0
    %592 = vmatprep.subr.mxu0 0.0
    %593 = vmatpush1.xpose.msra.mxu0 0.0
    %594 = vmatprep.subr.mxu0 0.0
    %595 = vmatpush1.xpose.msra.mxu0 0.0
    %596 = vmatprep.subr.mxu0 0.0
    %597 = vmatpush1.xpose.msra.mxu0 0.0
    %598 = vmatprep.subr.mxu0 0.0
    %599 = vmatpush1.xpose.msra.mxu0 0.0
    %600 = vmatprep.subr.mxu0 0.0
    %601 = vmatpush1.xpose.msra.mxu0 0.0
    %602 = vmatprep.subr.mxu0 0.0
    %603 = vmatpush1.xpose.msra.mxu0 0.0
    %604 = vmatprep.subr.mxu0 0.0
    %605 = vmatpush1.xpose.msra.mxu0 0.0
    %606 = vmatprep.subr.mxu0 0.0
    %607 = vmatpush1.xpose.msra.mxu0 0.0
    %608 = vmatprep.subr.mxu0 0.0
    %609 = vmatpush1.xpose.msra.mxu0 0.0
    %610 = vmatprep.subr.mxu0 0.0
    %611 = vmatpush1.xpose.msra.mxu0 0.0
    %612 = vmatprep.subr.mxu0 0.0
    %613 = vmatpush1.xpose.msra.mxu0 0.0
    %614 = vmatprep.subr.mxu0 0.0
    %615 = vmatpush1.xpose.msra.mxu0 0.0
    %616 = vmatprep.subr.mxu0 0.0
    %617 = vmatpush1.xpose.msra.mxu0 0.0
    %618 = vmatprep.subr.mxu0 0.0
    %619 = vmatpush1.xpose.msra.mxu0 0.0
    %620 = vmatprep.subr.mxu0 0.0
    %621 = vmatpush1.xpose.msra.mxu0 0.0
    %622 = vmatprep.subr.mxu0 0.0
    %623 = vmatpush1.xpose.msra.mxu0 0.0
    %624 = vmatprep.subr.mxu0 0.0
    %625 = vmatpush1.xpose.msra.mxu0 0.0
    %626 = vmatprep.subr.mxu0 0.0
    %627 = vmatpush1.xpose.msra.mxu0 0.0
    %628 = vmatprep.mubr.f32.mxu0 0.0
    %629 = vmatmul.mubr.f32.gmra.mrb[0].mxu0 %v559
    %v630 = vpop.f32.mrb[0].mxu0
    %v631 = vadd.f32 0.0, %v630
    %v632 = vpop.f32.mrb[0].mxu0
    %633 = vdwg.mxu0
    %v634 = vld [vmem:[#allocation3] sm:$0xff]
    %v635 = vld [vmem:[#allocation3 + $0x8] sm:$0xff]
    %v636 = vsel %vm481, %v555, -inf
    %637 = vmax.xlane.f32.xlu0 %v636
    %v638 = vpop.xlane.xlu0 %637
    %v639 = vsel %vm481, %v631, -inf
    %640 = vmax.xlane.f32.xlu0 %v639
    %v641 = vpop.xlane.xlu0 %640
    %v642 = vmax.f32 %v634, %v638
    %v643 = vmax.f32 %v635, %v641
    %v644 = vsub.f32 %v634, %v642
    %v645 = vsub.f32 %v635, %v643
    %v646 = vmul.f32 %v644, 1.442695
    %v647 = vpow.pop %v646
    %v648 = vmul.f32 %v645, 1.442695
    %v649 = vpow.pop %v648
    %651 = vset.pattern.permute.xlu0 0
    %652 = vperm.xlu0 %651, %v642
    %v653 = vpop.permute.xlu0 %652
    %656 = vset.pattern.permute.xlu0 0
    %657 = vperm.xlu0 %656, %v643
    %v658 = vpop.permute.xlu0 %657
    %v660 = vsub.f32 %v555, %v653
    %v661 = vsub.f32 %v631, %v658
    %v662 = vmul.f32 %v660, 1.442695
    %v663 = vpow.pop %v662
    %v664 = vmul.f32 %v661, 1.442695
    %v665 = vpow.pop %v664
    %v666 = vld [vmem:[#allocation4] sm:$0xff]
    %v667 = vld [vmem:[#allocation4 + $0x8] sm:$0xff]
    %v668 = vmul.f32 %v647, %v666
    %v669 = vmul.f32 %v649, %v667
    %v670 = vsel %vm481, %v663, 0.0
    %671 = vadd.xlane.f32.xlu0 %v670
    %v672 = vpop.xlane.xlu0 %671
    %v673 = vsel %vm481, %v665, 0.0
    %674 = vadd.xlane.f32.xlu0 %v673
    %v675 = vpop.xlane.xlu0 %674
    %v676 = vadd.f32 %v668, %v672
    %v677 = vadd.f32 %v669, %v675
    %vm678 = vcmask 7168
    %679 = vst.msk [vmem:[#allocation4] sm:$0xff] %vm678, %v676
    %680 = vst.msk [vmem:[#allocation4 + $0x8] sm:$0xff] %vm678, %v677
    %v682 = vsel %vm481, %v663, 0
    %684 = vmatprep.subr.mxu0 0.0
    %685 = vmatpush1.msra.mxu0 %v471
    %686 = vmatprep.subr.mxu0 0.0
    %687 = vmatpush1.msra.mxu0 0.0
    %688 = vmatprep.subr.mxu0 0.0
    %689 = vmatpush1.msra.mxu0 0.0
    %690 = vmatprep.subr.mxu0 0.0
    %691 = vmatpush1.msra.mxu0 0.0
    %692 = vmatprep.subr.mxu0 0.0
    %693 = vmatpush1.msra.mxu0 0.0
    %694 = vmatprep.subr.mxu0 0.0
    %695 = vmatpush1.msra.mxu0 0.0
    %696 = vmatprep.subr.mxu0 0.0
    %697 = vmatpush1.msra.mxu0 0.0
    %698 = vmatprep.subr.mxu0 0.0
    %699 = vmatpush1.msra.mxu0 0.0
    %700 = vmatprep.subr.mxu0 0.0
    %701 = vmatpush1.msra.mxu0 0.0
    %702 = vmatprep.subr.mxu0 0.0
    %703 = vmatpush1.msra.mxu0 0.0
    %704 = vmatprep.subr.mxu0 0.0
    %705 = vmatpush1.msra.mxu0 0.0
    %706 = vmatprep.subr.mxu0 0.0
    %707 = vmatpush1.msra.mxu0 0.0
    %708 = vmatprep.subr.mxu0 0.0
    %709 = vmatpush1.msra.mxu0 0.0
    %710 = vmatprep.subr.mxu0 0.0
    %711 = vmatpush1.msra.mxu0 0.0
    %712 = vmatprep.subr.mxu0 0.0
    %713 = vmatpush1.msra.mxu0 0.0
    %714 = vmatprep.subr.mxu0 0.0
    %715 = vmatpush1.msra.mxu0 0.0
    %716 = vmatprep.subr.mxu0 0.0
    %717 = vmatpush1.msra.mxu0 0.0
    %718 = vmatprep.subr.mxu0 0.0
    %719 = vmatpush1.msra.mxu0 0.0
    %720 = vmatprep.subr.mxu0 0.0
    %721 = vmatpush1.msra.mxu0 0.0
    %722 = vmatprep.subr.mxu0 0.0
    %723 = vmatpush1.msra.mxu0 0.0
    %724 = vmatprep.subr.mxu0 0.0
    %725 = vmatpush1.msra.mxu0 0.0
    %726 = vmatprep.subr.mxu0 0.0
    %727 = vmatpush1.msra.mxu0 0.0
    %728 = vmatprep.subr.mxu0 0.0
    %729 = vmatpush1.msra.mxu0 0.0
    %730 = vmatprep.subr.mxu0 0.0
    %731 = vmatpush1.msra.mxu0 0.0
    %732 = vmatprep.subr.mxu0 0.0
    %733 = vmatpush1.msra.mxu0 0.0
    %734 = vmatprep.subr.mxu0 0.0
    %735 = vmatpush1.msra.mxu0 0.0
    %736 = vmatprep.subr.mxu0 0.0
    %737 = vmatpush1.msra.mxu0 0.0
    %738 = vmatprep.subr.mxu0 0.0
    %739 = vmatpush1.msra.mxu0 0.0
    %740 = vmatprep.subr.mxu0 0.0
    %741 = vmatpush1.msra.mxu0 0.0
    %742 = vmatprep.subr.mxu0 0.0
    %743 = vmatpush1.msra.mxu0 0.0
    %744 = vmatprep.subr.mxu0 0.0
    %745 = vmatpush1.msra.mxu0 0.0
    %746 = vmatprep.subr.mxu0 0.0
    %747 = vmatpush1.msra.mxu0 0.0
    %748 = vmatprep.mubr.f32.mxu0 0.0
    %749 = vmatmul.mubr.f32.gmra.mrb[0].mxu0 %v682
    %v750 = vpop.f32.mrb[0].mxu0
    %v751 = vadd.f32 0.0, %v750
    %v752 = vpop.f32.mrb[0].mxu0
    %753 = vdwg.mxu0
    %v755 = vsel %vm481, %v665, 0
    %757 = vmatprep.subr.mxu0 0.0
    %758 = vmatpush1.msra.mxu0 %v476
    %759 = vmatprep.subr.mxu0 0.0
    %760 = vmatpush1.msra.mxu0 0.0
    %761 = vmatprep.subr.mxu0 0.0
    %762 = vmatpush1.msra.mxu0 0.0
    %763 = vmatprep.subr.mxu0 0.0
    %764 = vmatpush1.msra.mxu0 0.0
    %765 = vmatprep.subr.mxu0 0.0
    %766 = vmatpush1.msra.mxu0 0.0
    %767 = vmatprep.subr.mxu0 0.0
    %768 = vmatpush1.msra.mxu0 0.0
    %769 = vmatprep.subr.mxu0 0.0
    %770 = vmatpush1.msra.mxu0 0.0
    %771 = vmatprep.subr.mxu0 0.0
    %772 = vmatpush1.msra.mxu0 0.0
    %773 = vmatprep.subr.mxu0 0.0
    %774 = vmatpush1.msra.mxu0 0.0
    %775 = vmatprep.subr.mxu0 0.0
    %776 = vmatpush1.msra.mxu0 0.0
    %777 = vmatprep.subr.mxu0 0.0
    %778 = vmatpush1.msra.mxu0 0.0
    %779 = vmatprep.subr.mxu0 0.0
    %780 = vmatpush1.msra.mxu0 0.0
    %781 = vmatprep.subr.mxu0 0.0
    %782 = vmatpush1.msra.mxu0 0.0
    %783 = vmatprep.subr.mxu0 0.0
    %784 = vmatpush1.msra.mxu0 0.0
    %785 = vmatprep.subr.mxu0 0.0
    %786 = vmatpush1.msra.mxu0 0.0
    %787 = vmatprep.subr.mxu0 0.0
    %788 = vmatpush1.msra.mxu0 0.0
    %789 = vmatprep.subr.mxu0 0.0
    %790 = vmatpush1.msra.mxu0 0.0
    %791 = vmatprep.subr.mxu0 0.0
    %792 = vmatpush1.msra.mxu0 0.0
    %793 = vmatprep.subr.mxu0 0.0
    %794 = vmatpush1.msra.mxu0 0.0
    %795 = vmatprep.subr.mxu0 0.0
    %796 = vmatpush1.msra.mxu0 0.0
    %797 = vmatprep.subr.mxu0 0.0
    %798 = vmatpush1.msra.mxu0 0.0
    %799 = vmatprep.subr.mxu0 0.0
    %800 = vmatpush1.msra.mxu0 0.0
    %801 = vmatprep.subr.mxu0 0.0
    %802 = vmatpush1.msra.mxu0 0.0
    %803 = vmatprep.subr.mxu0 0.0
    %804 = vmatpush1.msra.mxu0 0.0
    %805 = vmatprep.subr.mxu0 0.0
    %806 = vmatpush1.msra.mxu0 0.0
    %807 = vmatprep.subr.mxu0 0.0
    %808 = vmatpush1.msra.mxu0 0.0
    %809 = vmatprep.subr.mxu0 0.0
    %810 = vmatpush1.msra.mxu0 0.0
    %811 = vmatprep.subr.mxu0 0.0
    %812 = vmatpush1.msra.mxu0 0.0
    %813 = vmatprep.subr.mxu0 0.0
    %814 = vmatpush1.msra.mxu0 0.0
    %815 = vmatprep.subr.mxu0 0.0
    %816 = vmatpush1.msra.mxu0 0.0
    %817 = vmatprep.subr.mxu0 0.0
    %818 = vmatpush1.msra.mxu0 0.0
    %819 = vmatprep.subr.mxu0 0.0
    %820 = vmatpush1.msra.mxu0 0.0
    %821 = vmatprep.mubr.f32.mxu0 0.0
    %822 = vmatmul.mubr.f32.gmra.mrb[0].mxu0 %v755
    %v823 = vpop.f32.mrb[0].mxu0
    %v824 = vadd.f32 0.0, %v823
    %v825 = vpop.f32.mrb[0].mxu0
    %826 = vdwg.mxu0
    %v827 = vld [vmem:[#allocation5] sm:$0xff]
    %v828 = vld [vmem:[#allocation5 + $0x8] sm:$0xff]
    %830 = vset.pattern.permute.xlu0 0
    %831 = vperm.xlu0 %830, %v647
    %v832 = vpop.permute.xlu0 %831
    %835 = vset.pattern.permute.xlu0 0
    %836 = vperm.xlu0 %835, %v649
    %v837 = vpop.permute.xlu0 %836
    %v839 = vmul.f32 %v832, %v827
    %v840 = vmul.f32 %v837, %v828
    %v841 = vadd.f32 %v839, %v751
    %v842 = vadd.f32 %v840, %v824
    %843 = vst.msk [vmem:[#allocation5] sm:$0xff] %vm481, %v841
    %844 = vst.msk [vmem:[#allocation5 + $0x8] sm:$0xff] %vm481, %v842
    %845 = vst.msk [vmem:[#allocation3] sm:$0xff] %vm678, %v642
    %846 = vst.msk [vmem:[#allocation3 + $0x8] sm:$0xff] %vm678, %v643
    %847 = vrot.lane.b32.xlu0 %v479, 120
    %v848 = vpop.permute.xlu0 %847
    %849 = vrot.lane.b32.xlu0 %v377, 120
    %v850 = vpop.permute.xlu0 %849
    %v851 = vsel %vm481, %v848, 0
    %v853 = vsel %vm481, %v850, 0
    %855 = vmatprep.subr.mxu0 0.0
    %856 = vmatpush1.xpose.msra.mxu0 %v853
    %857 = vmatprep.subr.mxu0 0.0
    %858 = vmatpush1.xpose.msra.mxu0 0.0
    %859 = vmatprep.subr.mxu0 0.0
    %860 = vmatpush1.xpose.msra.mxu0 0.0
    %861 = vmatprep.subr.mxu0 0.0
    %862 = vmatpush1.xpose.msra.mxu0 0.0
    %863 = vmatprep.subr.mxu0 0.0
    %864 = vmatpush1.xpose.msra.mxu0 0.0
    %865 = vmatprep.subr.mxu0 0.0
    %866 = vmatpush1.xpose.msra.mxu0 0.0
    %867 = vmatprep.subr.mxu0 0.0
    %868 = vmatpush1.xpose.msra.mxu0 0.0
    %869 = vmatprep.subr.mxu0 0.0
    %870 = vmatpush1.xpose.msra.mxu0 0.0
    %871 = vmatprep.subr.mxu0 0.0
    %872 = vmatpush1.xpose.msra.mxu0 0.0
    %873 = vmatprep.subr.mxu0 0.0
    %874 = vmatpush1.xpose.msra.mxu0 0.0
    %875 = vmatprep.subr.mxu0 0.0
    %876 = vmatpush1.xpose.msra.mxu0 0.0
    %877 = vmatprep.subr.mxu0 0.0
    %878 = vmatpush1.xpose.msra.mxu0 0.0
    %879 = vmatprep.subr.mxu0 0.0
    %880 = vmatpush1.xpose.msra.mxu0 0.0
    %881 = vmatprep.subr.mxu0 0.0
    %882 = vmatpush1.xpose.msra.mxu0 0.0
    %883 = vmatprep.subr.mxu0 0.0
    %884 = vmatpush1.xpose.msra.mxu0 0.0
    %885 = vmatprep.subr.mxu0 0.0
    %886 = vmatpush1.xpose.msra.mxu0 0.0
    %887 = vmatprep.subr.mxu0 0.0
    %888 = vmatpush1.xpose.msra.mxu0 0.0
    %889 = vmatprep.subr.mxu0 0.0
    %890 = vmatpush1.xpose.msra.mxu0 0.0
    %891 = vmatprep.subr.mxu0 0.0
    %892 = vmatpush1.xpose.msra.mxu0 0.0
    %893 = vmatprep.subr.mxu0 0.0
    %894 = vmatpush1.xpose.msra.mxu0 0.0
    %895 = vmatprep.subr.mxu0 0.0
    %896 = vmatpush1.xpose.msra.mxu0 0.0
    %897 = vmatprep.subr.mxu0 0.0
    %898 = vmatpush1.xpose.msra.mxu0 0.0
    %899 = vmatprep.subr.mxu0 0.0
    %900 = vmatpush1.xpose.msra.mxu0 0.0
    %901 = vmatprep.subr.mxu0 0.0
    %902 = vmatpush1.xpose.msra.mxu0 0.0
    %903 = vmatprep.subr.mxu0 0.0
    %904 = vmatpush1.xpose.msra.mxu0 0.0
    %905 = vmatprep.subr.mxu0 0.0
    %906 = vmatpush1.xpose.msra.mxu0 0.0
    %907 = vmatprep.subr.mxu0 0.0
    %908 = vmatpush1.xpose.msra.mxu0 0.0
    %909 = vmatprep.subr.mxu0 0.0
    %910 = vmatpush1.xpose.msra.mxu0 0.0
    %911 = vmatprep.subr.mxu0 0.0
    %912 = vmatpush1.xpose.msra.mxu0 0.0
    %913 = vmatprep.subr.mxu0 0.0
    %914 = vmatpush1.xpose.msra.mxu0 0.0
    %915 = vmatprep.subr.mxu0 0.0
    %916 = vmatpush1.xpose.msra.mxu0 0.0
    %917 = vmatprep.subr.mxu0 0.0
    %918 = vmatpush1.xpose.msra.mxu0 0.0
    %919 = vmatprep.mubr.f32.mxu0 0.0
    %920 = vmatmul.mubr.f32.gmra.mrb[0].mxu0 %v851
    %v921 = vpop.f32.mrb[0].mxu0
    %v922 = vadd.f32 0.0, %v921
    %v923 = vpop.f32.mrb[0].mxu0
    %924 = vdwg.mxu0
    %925 = vrot.lane.b32.xlu0 %v480, 120
    %v926 = vpop.permute.xlu0 %925
    %927 = vrot.lane.b32.xlu0 %v382, 120
    %v928 = vpop.permute.xlu0 %927
    %v929 = vsel %vm481, %v926, 0
    %v931 = vsel %vm481, %v928, 0
    %933 = vmatprep.subr.mxu0 0.0
    %934 = vmatpush1.xpose.msra.mxu0 %v931
    %935 = vmatprep.subr.mxu0 0.0
    %936 = vmatpush1.xpose.msra.mxu0 0.0
    %937 = vmatprep.subr.mxu0 0.0
    %938 = vmatpush1.xpose.msra.mxu0 0.0
    %939 = vmatprep.subr.mxu0 0.0
    %940 = vmatpush1.xpose.msra.mxu0 0.0
    %941 = vmatprep.subr.mxu0 0.0
    %942 = vmatpush1.xpose.msra.mxu0 0.0
    %943 = vmatprep.subr.mxu0 0.0
    %944 = vmatpush1.xpose.msra.mxu0 0.0
    %945 = vmatprep.subr.mxu0 0.0
    %946 = vmatpush1.xpose.msra.mxu0 0.0
    %947 = vmatprep.subr.mxu0 0.0
    %948 = vmatpush1.xpose.msra.mxu0 0.0
    %949 = vmatprep.subr.mxu0 0.0
    %950 = vmatpush1.xpose.msra.mxu0 0.0
    %951 = vmatprep.subr.mxu0 0.0
    %952 = vmatpush1.xpose.msra.mxu0 0.0
    %953 = vmatprep.subr.mxu0 0.0
    %954 = vmatpush1.xpose.msra.mxu0 0.0
    %955 = vmatprep.subr.mxu0 0.0
    %956 = vmatpush1.xpose.msra.mxu0 0.0
    %957 = vmatprep.subr.mxu0 0.0
    %958 = vmatpush1.xpose.msra.mxu0 0.0
    %959 = vmatprep.subr.mxu0 0.0
    %960 = vmatpush1.xpose.msra.mxu0 0.0
    %961 = vmatprep.subr.mxu0 0.0
    %962 = vmatpush1.xpose.msra.mxu0 0.0
    %963 = vmatprep.subr.mxu0 0.0
    %964 = vmatpush1.xpose.msra.mxu0 0.0
    %965 = vmatprep.subr.mxu0 0.0
    %966 = vmatpush1.xpose.msra.mxu0 0.0
    %967 = vmatprep.subr.mxu0 0.0
    %968 = vmatpush1.xpose.msra.mxu0 0.0
    %969 = vmatprep.subr.mxu0 0.0
    %970 = vmatpush1.xpose.msra.mxu0 0.0
    %971 = vmatprep.subr.mxu0 0.0
    %972 = vmatpush1.xpose.msra.mxu0 0.0
    %973 = vmatprep.subr.mxu0 0.0
    %974 = vmatpush1.xpose.msra.mxu0 0.0
    %975 = vmatprep.subr.mxu0 0.0
    %976 = vmatpush1.xpose.msra.mxu0 0.0
    %977 = vmatprep.subr.mxu0 0.0
    %978 = vmatpush1.xpose.msra.mxu0 0.0
    %979 = vmatprep.subr.mxu0 0.0
    %980 = vmatpush1.xpose.msra.mxu0 0.0
    %981 = vmatprep.subr.mxu0 0.0
    %982 = vmatpush1.xpose.msra.mxu0 0.0
    %983 = vmatprep.subr.mxu0 0.0
    %984 = vmatpush1.xpose.msra.mxu0 0.0
    %985 = vmatprep.subr.mxu0 0.0
    %986 = vmatpush1.xpose.msra.mxu0 0.0
    %987 = vmatprep.subr.mxu0 0.0
    %988 = vmatpush1.xpose.msra.mxu0 0.0
    %989 = vmatprep.subr.mxu0 0.0
    %990 = vmatpush1.xpose.msra.mxu0 0.0
    %991 = vmatprep.subr.mxu0 0.0
    %992 = vmatpush1.xpose.msra.mxu0 0.0
    %993 = vmatprep.subr.mxu0 0.0
    %994 = vmatpush1.xpose.msra.mxu0 0.0
    %995 = vmatprep.subr.mxu0 0.0
    %996 = vmatpush1.xpose.msra.mxu0 0.0
    %997 = vmatprep.mubr.f32.mxu0 0.0
    %998 = vmatmul.mubr.f32.gmra.mrb[0].mxu0 %v929
    %v999 = vpop.f32.mrb[0].mxu0
    %v1000 = vadd.f32 0.0, %v999
    %v1001 = vpop.f32.mrb[0].mxu0
    %1002 = vdwg.mxu0
    %v1003 = vld [vmem:[#allocation3] sm:$0xff]
    %v1004 = vld [vmem:[#allocation3 + $0x8] sm:$0xff]
    %v1005 = vsel %vm481, %v922, -inf
    %1006 = vmax.xlane.f32.xlu0 %v1005
    %v1007 = vpop.xlane.xlu0 %1006
    %v1008 = vsel %vm481, %v1000, -inf
    %1009 = vmax.xlane.f32.xlu0 %v1008
    %v1010 = vpop.xlane.xlu0 %1009
    %v1011 = vmax.f32 %v1003, %v1007
    %v1012 = vmax.f32 %v1004, %v1010
    %v1013 = vsub.f32 %v1003, %v1011
    %v1014 = vsub.f32 %v1004, %v1012
    %v1015 = vmul.f32 %v1013, 1.442695
    %v1016 = vpow.pop %v1015
    %v1017 = vmul.f32 %v1014, 1.442695
    %v1018 = vpow.pop %v1017
    %1020 = vset.pattern.permute.xlu0 1
    %1021 = vperm.xlu0 %1020, %v1011
    %v1022 = vpop.permute.xlu0 %1021
    %1025 = vset.pattern.permute.xlu0 1
    %1026 = vperm.xlu0 %1025, %v1012
    %v1027 = vpop.permute.xlu0 %1026
    %v1029 = vsub.f32 %v922, %v1022
    %v1030 = vsub.f32 %v1000, %v1027
    %v1031 = vmul.f32 %v1029, 1.442695
    %v1032 = vpow.pop %v1031
    %v1033 = vmul.f32 %v1030, 1.442695
    %v1034 = vpow.pop %v1033
    %v1035 = vld [vmem:[#allocation4] sm:$0xff]
    %v1036 = vld [vmem:[#allocation4 + $0x8] sm:$0xff]
    %v1037 = vmul.f32 %v1016, %v1035
    %v1038 = vmul.f32 %v1018, %v1036
    %v1039 = vsel %vm481, %v1032, 0.0
    %1040 = vadd.xlane.f32.xlu0 %v1039
    %v1041 = vpop.xlane.xlu0 %1040
    %v1042 = vsel %vm481, %v1034, 0.0
    %1043 = vadd.xlane.f32.xlu0 %v1042
    %v1044 = vpop.xlane.xlu0 %1043
    %v1045 = vadd.f32 %v1037, %v1041
    %v1046 = vadd.f32 %v1038, %v1044
    %vm1047 = vcmask 15368
    %1048 = vst.msk [vmem:[#allocation4] sm:$0xff] %vm1047, %v1045
    %1049 = vst.msk [vmem:[#allocation4 + $0x8] sm:$0xff] %vm1047, %v1046
    %1051 = vrot.lane.b32.xlu0 %v471, 120
    %v1052 = vpop.permute.xlu0 %1051
    %v1055 = vsel %vm481, %v1032, 0
    %1057 = vmatprep.subr.mxu0 0.0
    %1058 = vmatpush1.msra.mxu0 %v1052
    %1059 = vmatprep.subr.mxu0 0.0
    %1060 = vmatpush1.msra.mxu0 0.0
    %1061 = vmatprep.subr.mxu0 0.0
    %1062 = vmatpush1.msra.mxu0 0.0
    %1063 = vmatprep.subr.mxu0 0.0
    %1064 = vmatpush1.msra.mxu0 0.0
    %1065 = vmatprep.subr.mxu0 0.0
    %1066 = vmatpush1.msra.mxu0 0.0
    %1067 = vmatprep.subr.mxu0 0.0
    %1068 = vmatpush1.msra.mxu0 0.0
    %1069 = vmatprep.subr.mxu0 0.0
    %1070 = vmatpush1.msra.mxu0 0.0
    %1071 = vmatprep.subr.mxu0 0.0
    %1072 = vmatpush1.msra.mxu0 0.0
    %1073 = vmatprep.subr.mxu0 0.0
    %1074 = vmatpush1.msra.mxu0 0.0
    %1075 = vmatprep.subr.mxu0 0.0
    %1076 = vmatpush1.msra.mxu0 0.0
    %1077 = vmatprep.subr.mxu0 0.0
    %1078 = vmatpush1.msra.mxu0 0.0
    %1079 = vmatprep.subr.mxu0 0.0
    %1080 = vmatpush1.msra.mxu0 0.0
    %1081 = vmatprep.subr.mxu0 0.0
    %1082 = vmatpush1.msra.mxu0 0.0
    %1083 = vmatprep.subr.mxu0 0.0
    %1084 = vmatpush1.msra.mxu0 0.0
    %1085 = vmatprep.subr.mxu0 0.0
    %1086 = vmatpush1.msra.mxu0 0.0
    %1087 = vmatprep.subr.mxu0 0.0
    %1088 = vmatpush1.msra.mxu0 0.0
    %1089 = vmatprep.subr.mxu0 0.0
    %1090 = vmatpush1.msra.mxu0 0.0
    %1091 = vmatprep.subr.mxu0 0.0
    %1092 = vmatpush1.msra.mxu0 0.0
    %1093 = vmatprep.subr.mxu0 0.0
    %1094 = vmatpush1.msra.mxu0 0.0
    %1095 = vmatprep.subr.mxu0 0.0
    %1096 = vmatpush1.msra.mxu0 0.0
    %1097 = vmatprep.subr.mxu0 0.0
    %1098 = vmatpush1.msra.mxu0 0.0
    %1099 = vmatprep.subr.mxu0 0.0
    %1100 = vmatpush1.msra.mxu0 0.0
    %1101 = vmatprep.subr.mxu0 0.0
    %1102 = vmatpush1.msra.mxu0 0.0
    %1103 = vmatprep.subr.mxu0 0.0
    %1104 = vmatpush1.msra.mxu0 0.0
    %1105 = vmatprep.subr.mxu0 0.0
    %1106 = vmatpush1.msra.mxu0 0.0
    %1107 = vmatprep.subr.mxu0 0.0
    %1108 = vmatpush1.msra.mxu0 0.0
    %1109 = vmatprep.subr.mxu0 0.0
    %1110 = vmatpush1.msra.mxu0 0.0
    %1111 = vmatprep.subr.mxu0 0.0
    %1112 = vmatpush1.msra.mxu0 0.0
    %1113 = vmatprep.subr.mxu0 0.0
    %1114 = vmatpush1.msra.mxu0 0.0
    %1115 = vmatprep.subr.mxu0 0.0
    %1116 = vmatpush1.msra.mxu0 0.0
    %1117 = vmatprep.subr.mxu0 0.0
    %1118 = vmatpush1.msra.mxu0 0.0
    %1119 = vmatprep.subr.mxu0 0.0
    %1120 = vmatpush1.msra.mxu0 0.0
    %1121 = vmatprep.mubr.f32.mxu0 0.0
    %1122 = vmatmul.mubr.f32.gmra.mrb[0].mxu0 %v1055
    %v1123 = vpop.f32.mrb[0].mxu0
    %v1124 = vadd.f32 0.0, %v1123
    %v1125 = vpop.f32.mrb[0].mxu0
    %1126 = vdwg.mxu0
    %1128 = vrot.lane.b32.xlu0 %v476, 120
    %v1129 = vpop.permute.xlu0 %1128
    %v1132 = vsel %vm481, %v1034, 0
    %1134 = vmatprep.subr.mxu0 0.0
    %1135 = vmatpush1.msra.mxu0 %v1129
    %1136 = vmatprep.subr.mxu0 0.0
    %1137 = vmatpush1.msra.mxu0 0.0
    %1138 = vmatprep.subr.mxu0 0.0
    %1139 = vmatpush1.msra.mxu0 0.0
    %1140 = vmatprep.subr.mxu0 0.0
    %1141 = vmatpush1.msra.mxu0 0.0
    %1142 = vmatprep.subr.mxu0 0.0
    %1143 = vmatpush1.msra.mxu0 0.0
    %1144 = vmatprep.subr.mxu0 0.0
    %1145 = vmatpush1.msra.mxu0 0.0
    %1146 = vmatprep.subr.mxu0 0.0
    %1147 = vmatpush1.msra.mxu0 0.0
    %1148 = vmatprep.subr.mxu0 0.0
    %1149 = vmatpush1.msra.mxu0 0.0
    %1150 = vmatprep.subr.mxu0 0.0
    %1151 = vmatpush1.msra.mxu0 0.0
    %1152 = vmatprep.subr.mxu0 0.0
    %1153 = vmatpush1.msra.mxu0 0.0
    %1154 = vmatprep.subr.mxu0 0.0
    %1155 = vmatpush1.msra.mxu0 0.0
    %1156 = vmatprep.subr.mxu0 0.0
    %1157 = vmatpush1.msra.mxu0 0.0
    %1158 = vmatprep.subr.mxu0 0.0
    %1159 = vmatpush1.msra.mxu0 0.0
    %1160 = vmatprep.subr.mxu0 0.0
    %1161 = vmatpush1.msra.mxu0 0.0
    %1162 = vmatprep.subr.mxu0 0.0
    %1163 = vmatpush1.msra.mxu0 0.0
    %1164 = vmatprep.subr.mxu0 0.0
    %1165 = vmatpush1.msra.mxu0 0.0
    %1166 = vmatprep.subr.mxu0 0.0
    %1167 = vmatpush1.msra.mxu0 0.0
    %1168 = vmatprep.subr.mxu0 0.0
    %1169 = vmatpush1.msra.mxu0 0.0
    %1170 = vmatprep.subr.mxu0 0.0
    %1171 = vmatpush1.msra.mxu0 0.0
    %1172 = vmatprep.subr.mxu0 0.0
    %1173 = vmatpush1.msra.mxu0 0.0
    %1174 = vmatprep.subr.mxu0 0.0
    %1175 = vmatpush1.msra.mxu0 0.0
    %1176 = vmatprep.subr.mxu0 0.0
    %1177 = vmatpush1.msra.mxu0 0.0
    %1178 = vmatprep.subr.mxu0 0.0
    %1179 = vmatpush1.msra.mxu0 0.0
    %1180 = vmatprep.subr.mxu0 0.0
    %1181 = vmatpush1.msra.mxu0 0.0
    %1182 = vmatprep.subr.mxu0 0.0
    %1183 = vmatpush1.msra.mxu0 0.0
    %1184 = vmatprep.subr.mxu0 0.0
    %1185 = vmatpush1.msra.mxu0 0.0
    %1186 = vmatprep.subr.mxu0 0.0
    %1187 = vmatpush1.msra.mxu0 0.0
    %1188 = vmatprep.subr.mxu0 0.0
    %1189 = vmatpush1.msra.mxu0 0.0
    %1190 = vmatprep.subr.mxu0 0.0
    %1191 = vmatpush1.msra.mxu0 0.0
    %1192 = vmatprep.subr.mxu0 0.0
    %1193 = vmatpush1.msra.mxu0 0.0
    %1194 = vmatprep.subr.mxu0 0.0
    %1195 = vmatpush1.msra.mxu0 0.0
    %1196 = vmatprep.subr.mxu0 0.0
    %1197 = vmatpush1.msra.mxu0 0.0
    %1198 = vmatprep.mubr.f32.mxu0 0.0
    %1199 = vmatmul.mubr.f32.gmra.mrb[0].mxu0 %v1132
    %v1200 = vpop.f32.mrb[0].mxu0
    %v1201 = vadd.f32 0.0, %v1200
    %v1202 = vpop.f32.mrb[0].mxu0
    %1203 = vdwg.mxu0
    %v1204 = vld [vmem:[#allocation5] sm:$0xff]
    %v1205 = vld [vmem:[#allocation5 + $0x8] sm:$0xff]
    %1207 = vset.pattern.permute.xlu0 1
    %1208 = vperm.xlu0 %1207, %v1016
    %v1209 = vpop.permute.xlu0 %1208
    %1212 = vset.pattern.permute.xlu0 1
    %1213 = vperm.xlu0 %1212, %v1018
    %v1214 = vpop.permute.xlu0 %1213
    %v1216 = vmul.f32 %v1209, %v1204
    %v1217 = vmul.f32 %v1214, %v1205
    %1220 = vrot.lane.b32.xlu0 %v1124, 8
    %v1221 = vpop.permute.xlu0 %1220
    %1222 = vrot.lane.b32.xlu0 %v1201, 8
    %v1223 = vpop.permute.xlu0 %1222
    %v1226 = vadd.f32 %v1216, %v1221
    %v1227 = vadd.f32 %v1217, %v1223
    %vm1228 = vcmask 130112
    %1229 = vst.msk [vmem:[#allocation5] sm:$0xff] %vm1228, %v1226
    %1230 = vst.msk [vmem:[#allocation5 + $0x8] sm:$0xff] %vm1228, %v1227
    %1231 = vst.msk [vmem:[#allocation3] sm:$0xff] %vm1047, %v1011
    %1232 = vst.msk [vmem:[#allocation3 + $0x8] sm:$0xff] %vm1047, %v1012
    %1233 = vrot.lane.b32.xlu0 %v479, 112
    %v1234 = vpop.permute.xlu0 %1233
    %1235 = vrot.lane.b32.xlu0 %v377, 112
    %v1236 = vpop.permute.xlu0 %1235
    %v1237 = vsel %vm481, %v1234, 0
    %v1239 = vsel %vm481, %v1236, 0
    %1241 = vmatprep.subr.mxu0 0.0
    %1242 = vmatpush1.xpose.msra.mxu0 %v1239
    %1243 = vmatprep.subr.mxu0 0.0
    %1244 = vmatpush1.xpose.msra.mxu0 0.0
    %1245 = vmatprep.subr.mxu0 0.0
    %1246 = vmatpush1.xpose.msra.mxu0 0.0
    %1247 = vmatprep.subr.mxu0 0.0
    %1248 = vmatpush1.xpose.msra.mxu0 0.0
    %1249 = vmatprep.subr.mxu0 0.0
    %1250 = vmatpush1.xpose.msra.mxu0 0.0
    %1251 = vmatprep.subr.mxu0 0.0
    %1252 = vmatpush1.xpose.msra.mxu0 0.0
    %1253 = vmatprep.subr.mxu0 0.0
    %1254 = vmatpush1.xpose.msra.mxu0 0.0
    %1255 = vmatprep.subr.mxu0 0.0
    %1256 = vmatpush1.xpose.msra.mxu0 0.0
    %1257 = vmatprep.subr.mxu0 0.0
    %1258 = vmatpush1.xpose.msra.mxu0 0.0
    %1259 = vmatprep.subr.mxu0 0.0
    %1260 = vmatpush1.xpose.msra.mxu0 0.0
    %1261 = vmatprep.subr.mxu0 0.0
    %1262 = vmatpush1.xpose.msra.mxu0 0.0
    %1263 = vmatprep.subr.mxu0 0.0
    %1264 = vmatpush1.xpose.msra.mxu0 0.0
    %1265 = vmatprep.subr.mxu0 0.0
    %1266 = vmatpush1.xpose.msra.mxu0 0.0
    %1267 = vmatprep.subr.mxu0 0.0
    %1268 = vmatpush1.xpose.msra.mxu0 0.0
    %1269 = vmatprep.subr.mxu0 0.0
    %1270 = vmatpush1.xpose.msra.mxu0 0.0
    %1271 = vmatprep.subr.mxu0 0.0
    %1272 = vmatpush1.xpose.msra.mxu0 0.0
    %1273 = vmatprep.subr.mxu0 0.0
    %1274 = vmatpush1.xpose.msra.mxu0 0.0
    %1275 = vmatprep.subr.mxu0 0.0
    %1276 = vmatpush1.xpose.msra.mxu0 0.0
    %1277 = vmatprep.subr.mxu0 0.0
    %1278 = vmatpush1.xpose.msra.mxu0 0.0
    %1279 = vmatprep.subr.mxu0 0.0
    %1280 = vmatpush1.xpose.msra.mxu0 0.0
    %1281 = vmatprep.subr.mxu0 0.0
    %1282 = vmatpush1.xpose.msra.mxu0 0.0
    %1283 = vmatprep.subr.mxu0 0.0
    %1284 = vmatpush1.xpose.msra.mxu0 0.0
    %1285 = vmatprep.subr.mxu0 0.0
    %1286 = vmatpush1.xpose.msra.mxu0 0.0
    %1287 = vmatprep.subr.mxu0 0.0
    %1288 = vmatpush1.xpose.msra.mxu0 0.0
    %1289 = vmatprep.subr.mxu0 0.0
    %1290 = vmatpush1.xpose.msra.mxu0 0.0
    %1291 = vmatprep.subr.mxu0 0.0
    %1292 = vmatpush1.xpose.msra.mxu0 0.0
    %1293 = vmatprep.subr.mxu0 0.0
    %1294 = vmatpush1.xpose.msra.mxu0 0.0
    %1295 = vmatprep.subr.mxu0 0.0
    %1296 = vmatpush1.xpose.msra.mxu0 0.0
    %1297 = vmatprep.subr.mxu0 0.0
    %1298 = vmatpush1.xpose.msra.mxu0 0.0
    %1299 = vmatprep.subr.mxu0 0.0
    %1300 = vmatpush1.xpose.msra.mxu0 0.0
    %1301 = vmatprep.subr.mxu0 0.0
    %1302 = vmatpush1.xpose.msra.mxu0 0.0
    %1303 = vmatprep.subr.mxu0 0.0
    %1304 = vmatpush1.xpose.msra.mxu0 0.0
    %1305 = vmatprep.mubr.f32.mxu0 0.0
    %1306 = vmatmul.mubr.f32.gmra.mrb[0].mxu0 %v1237
    %v1307 = vpop.f32.mrb[0].mxu0
    %v1308 = vadd.f32 0.0, %v1307
    %v1309 = vpop.f32.mrb[0].mxu0
    %1310 = vdwg.mxu0
    %1311 = vrot.lane.b32.xlu0 %v480, 112
    %v1312 = vpop.permute.xlu0 %1311
    %1313 = vrot.lane.b32.xlu0 %v382, 112
    %v1314 = vpop.permute.xlu0 %1313
    %v1315 = vsel %vm481, %v1312, 0
    %v1317 = vsel %vm481, %v1314, 0
    %1319 = vmatprep.subr.mxu0 0.0
    %1320 = vmatpush1.xpose.msra.mxu0 %v1317
    %1321 = vmatprep.subr.mxu0 0.0
    %1322 = vmatpush1.xpose.msra.mxu0 0.0
    %1323 = vmatprep.subr.mxu0 0.0
    %1324 = vmatpush1.xpose.msra.mxu0 0.0
    %1325 = vmatprep.subr.mxu0 0.0
    %1326 = vmatpush1.xpose.msra.mxu0 0.0
    %1327 = vmatprep.subr.mxu0 0.0
    %1328 = vmatpush1.xpose.msra.mxu0 0.0
    %1329 = vmatprep.subr.mxu0 0.0
    %1330 = vmatpush1.xpose.msra.mxu0 0.0
    %1331 = vmatprep.subr.mxu0 0.0
    %1332 = vmatpush1.xpose.msra.mxu0 0.0
    %1333 = vmatprep.subr.mxu0 0.0
    %1334 = vmatpush1.xpose.msra.mxu0 0.0
    %1335 = vmatprep.subr.mxu0 0.0
    %1336 = vmatpush1.xpose.msra.mxu0 0.0
    %1337 = vmatprep.subr.mxu0 0.0
    %1338 = vmatpush1.xpose.msra.mxu0 0.0
    %1339 = vmatprep.subr.mxu0 0.0
    %1340 = vmatpush1.xpose.msra.mxu0 0.0
    %1341 = vmatprep.subr.mxu0 0.0
    %1342 = vmatpush1.xpose.msra.mxu0 0.0
    %1343 = vmatprep.subr.mxu0 0.0
    %1344 = vmatpush1.xpose.msra.mxu0 0.0
    %1345 = vmatprep.subr.mxu0 0.0
    %1346 = vmatpush1.xpose.msra.mxu0 0.0
    %1347 = vmatprep.subr.mxu0 0.0
    %1348 = vmatpush1.xpose.msra.mxu0 0.0
    %1349 = vmatprep.subr.mxu0 0.0
    %1350 = vmatpush1.xpose.msra.mxu0 0.0
    %1351 = vmatprep.subr.mxu0 0.0
    %1352 = vmatpush1.xpose.msra.mxu0 0.0
    %1353 = vmatprep.subr.mxu0 0.0
    %1354 = vmatpush1.xpose.msra.mxu0 0.0
    %1355 = vmatprep.subr.mxu0 0.0
    %1356 = vmatpush1.xpose.msra.mxu0 0.0
    %1357 = vmatprep.subr.mxu0 0.0
    %1358 = vmatpush1.xpose.msra.mxu0 0.0
    %1359 = vmatprep.subr.mxu0 0.0
    %1360 = vmatpush1.xpose.msra.mxu0 0.0
    %1361 = vmatprep.subr.mxu0 0.0
    %1362 = vmatpush1.xpose.msra.mxu0 0.0
    %1363 = vmatprep.subr.mxu0 0.0
    %1364 = vmatpush1.xpose.msra.mxu0 0.0
    %1365 = vmatprep.subr.mxu0 0.0
    %1366 = vmatpush1.xpose.msra.mxu0 0.0
    %1367 = vmatprep.subr.mxu0 0.0
    %1368 = vmatpush1.xpose.msra.mxu0 0.0
    %1369 = vmatprep.subr.mxu0 0.0
    %1370 = vmatpush1.xpose.msra.mxu0 0.0
    %1371 = vmatprep.subr.mxu0 0.0
    %1372 = vmatpush1.xpose.msra.mxu0 0.0
    %1373 = vmatprep.subr.mxu0 0.0
    %1374 = vmatpush1.xpose.msra.mxu0 0.0
    %1375 = vmatprep.subr.mxu0 0.0
    %1376 = vmatpush1.xpose.msra.mxu0 0.0
    %1377 = vmatprep.subr.mxu0 0.0
    %1378 = vmatpush1.xpose.msra.mxu0 0.0
    %1379 = vmatprep.subr.mxu0 0.0
    %1380 = vmatpush1.xpose.msra.mxu0 0.0
    %1381 = vmatprep.subr.mxu0 0.0
    %1382 = vmatpush1.xpose.msra.mxu0 0.0
    %1383 = vmatprep.mubr.f32.mxu0 0.0
    %1384 = vmatmul.mubr.f32.gmra.mrb[0].mxu0 %v1315
    %v1385 = vpop.f32.mrb[0].mxu0
    %v1386 = vadd.f32 0.0, %v1385
    %v1387 = vpop.f32.mrb[0].mxu0
    %1388 = vdwg.mxu0
    %v1389 = vld [vmem:[#allocation3] sm:$0xff]
    %v1390 = vld [vmem:[#allocation3 + $0x8] sm:$0xff]
    %v1391 = vsel %vm481, %v1308, -inf
    %1392 = vmax.xlane.f32.xlu0 %v1391
    %v1393 = vpop.xlane.xlu0 %1392
    %v1394 = vsel %vm481, %v1386, -inf
    %1395 = vmax.xlane.f32.xlu0 %v1394
    %v1396 = vpop.xlane.xlu0 %1395
    %v1397 = vmax.f32 %v1389, %v1393
    %v1398 = vmax.f32 %v1390, %v1396
    %v1399 = vsub.f32 %v1389, %v1397
    %v1400 = vsub.f32 %v1390, %v1398
    %v1401 = vmul.f32 %v1399, 1.442695
    %v1402 = vpow.pop %v1401
    %v1403 = vmul.f32 %v1400, 1.442695
    %v1404 = vpow.pop %v1403
    %1406 = vset.pattern.permute.xlu0 2
    %1407 = vperm.xlu0 %1406, %v1397
    %v1408 = vpop.permute.xlu0 %1407
    %1411 = vset.pattern.permute.xlu0 2
    %1412 = vperm.xlu0 %1411, %v1398
    %v1413 = vpop.permute.xlu0 %1412
    %v1415 = vsub.f32 %v1308, %v1408
    %v1416 = vsub.f32 %v1386, %v1413
    %v1417 = vmul.f32 %v1415, 1.442695
    %v1418 = vpow.pop %v1417
    %v1419 = vmul.f32 %v1416, 1.442695
    %v1420 = vpow.pop %v1419
    %v1421 = vld [vmem:[#allocation4] sm:$0xff]
    %v1422 = vld [vmem:[#allocation4 + $0x8] sm:$0xff]
    %v1423 = vmul.f32 %v1402, %v1421
    %v1424 = vmul.f32 %v1404, %v1422
    %v1425 = vsel %vm481, %v1418, 0.0
    %1426 = vadd.xlane.f32.xlu0 %v1425
    %v1427 = vpop.xlane.xlu0 %1426
    %v1428 = vsel %vm481, %v1420, 0.0
    %1429 = vadd.xlane.f32.xlu0 %v1428
    %v1430 = vpop.xlane.xlu0 %1429
    %v1431 = vadd.f32 %v1423, %v1427
    %v1432 = vadd.f32 %v1424, %v1430
    %vm1433 = vcmask 23568
    %1434 = vst.msk [vmem:[#allocation4] sm:$0xff] %vm1433, %v1431
    %1435 = vst.msk [vmem:[#allocation4 + $0x8] sm:$0xff] %vm1433, %v1432
    %1436 = vrot.lane.b32.xlu0 %v471, 112
    %v1437 = vpop.permute.xlu0 %1436
    %v1440 = vsel %vm481, %v1418, 0
    %1442 = vmatprep.subr.mxu0 0.0
    %1443 = vmatpush1.msra.mxu0 %v1437
    %1444 = vmatprep.subr.mxu0 0.0
    %1445 = vmatpush1.msra.mxu0 0.0
    %1446 = vmatprep.subr.mxu0 0.0
    %1447 = vmatpush1.msra.mxu0 0.0
    %1448 = vmatprep.subr.mxu0 0.0
    %1449 = vmatpush1.msra.mxu0 0.0
    %1450 = vmatprep.subr.mxu0 0.0
    %1451 = vmatpush1.msra.mxu0 0.0
    %1452 = vmatprep.subr.mxu0 0.0
    %1453 = vmatpush1.msra.mxu0 0.0
    %1454 = vmatprep.subr.mxu0 0.0
    %1455 = vmatpush1.msra.mxu0 0.0
    %1456 = vmatprep.subr.mxu0 0.0
    %1457 = vmatpush1.msra.mxu0 0.0
    %1458 = vmatprep.subr.mxu0 0.0
    %1459 = vmatpush1.msra.mxu0 0.0
    %1460 = vmatprep.subr.mxu0 0.0
    %1461 = vmatpush1.msra.mxu0 0.0
    %1462 = vmatprep.subr.mxu0 0.0
    %1463 = vmatpush1.msra.mxu0 0.0
    %1464 = vmatprep.subr.mxu0 0.0
    %1465 = vmatpush1.msra.mxu0 0.0
    %1466 = vmatprep.subr.mxu0 0.0
    %1467 = vmatpush1.msra.mxu0 0.0
    %1468 = vmatprep.subr.mxu0 0.0
    %1469 = vmatpush1.msra.mxu0 0.0
    %1470 = vmatprep.subr.mxu0 0.0
    %1471 = vmatpush1.msra.mxu0 0.0
    %1472 = vmatprep.subr.mxu0 0.0
    %1473 = vmatpush1.msra.mxu0 0.0
    %1474 = vmatprep.subr.mxu0 0.0
    %1475 = vmatpush1.msra.mxu0 0.0
    %1476 = vmatprep.subr.mxu0 0.0
    %1477 = vmatpush1.msra.mxu0 0.0
    %1478 = vmatprep.subr.mxu0 0.0
    %1479 = vmatpush1.msra.mxu0 0.0
    %1480 = vmatprep.subr.mxu0 0.0
    %1481 = vmatpush1.msra.mxu0 0.0
    %1482 = vmatprep.subr.mxu0 0.0
    %1483 = vmatpush1.msra.mxu0 0.0
    %1484 = vmatprep.subr.mxu0 0.0
    %1485 = vmatpush1.msra.mxu0 0.0
    %1486 = vmatprep.subr.mxu0 0.0
    %1487 = vmatpush1.msra.mxu0 0.0
    %1488 = vmatprep.subr.mxu0 0.0
    %1489 = vmatpush1.msra.mxu0 0.0
    %1490 = vmatprep.subr.mxu0 0.0
    %1491 = vmatpush1.msra.mxu0 0.0
    %1492 = vmatprep.subr.mxu0 0.0
    %1493 = vmatpush1.msra.mxu0 0.0
    %1494 = vmatprep.subr.mxu0 0.0
    %1495 = vmatpush1.msra.mxu0 0.0
    %1496 = vmatprep.subr.mxu0 0.0
    %1497 = vmatpush1.msra.mxu0 0.0
    %1498 = vmatprep.subr.mxu0 0.0
    %1499 = vmatpush1.msra.mxu0 0.0
    %1500 = vmatprep.subr.mxu0 0.0
    %1501 = vmatpush1.msra.mxu0 0.0
    %1502 = vmatprep.subr.mxu0 0.0
    %1503 = vmatpush1.msra.mxu0 0.0
    %1504 = vmatprep.subr.mxu0 0.0
    %1505 = vmatpush1.msra.mxu0 0.0
    %1506 = vmatprep.mubr.f32.mxu0 0.0
    %1507 = vmatmul.mubr.f32.gmra.mrb[0].mxu0 %v1440
    %v1508 = vpop.f32.mrb[0].mxu0
    %v1509 = vadd.f32 0.0, %v1508
    %v1510 = vpop.f32.mrb[0].mxu0
    %1511 = vdwg.mxu0
    %1512 = vrot.lane.b32.xlu0 %v476, 112
    %v1513 = vpop.permute.xlu0 %1512
    %v1516 = vsel %vm481, %v1420, 0
    %1518 = vmatprep.subr.mxu0 0.0
    %1519 = vmatpush1.msra.mxu0 %v1513
    %1520 = vmatprep.subr.mxu0 0.0
    %1521 = vmatpush1.msra.mxu0 0.0
    %1522 = vmatprep.subr.mxu0 0.0
    %1523 = vmatpush1.msra.mxu0 0.0
    %1524 = vmatprep.subr.mxu0 0.0
    %1525 = vmatpush1.msra.mxu0 0.0
    %1526 = vmatprep.subr.mxu0 0.0
    %1527 = vmatpush1.msra.mxu0 0.0
    %1528 = vmatprep.subr.mxu0 0.0
    %1529 = vmatpush1.msra.mxu0 0.0
    %1530 = vmatprep.subr.mxu0 0.0
    %1531 = vmatpush1.msra.mxu0 0.0
    %1532 = vmatprep.subr.mxu0 0.0
    %1533 = vmatpush1.msra.mxu0 0.0
    %1534 = vmatprep.subr.mxu0 0.0
    %1535 = vmatpush1.msra.mxu0 0.0
    %1536 = vmatprep.subr.mxu0 0.0
    %1537 = vmatpush1.msra.mxu0 0.0
    %1538 = vmatprep.subr.mxu0 0.0
    %1539 = vmatpush1.msra.mxu0 0.0
    %1540 = vmatprep.subr.mxu0 0.0
    %1541 = vmatpush1.msra.mxu0 0.0
    %1542 = vmatprep.subr.mxu0 0.0
    %1543 = vmatpush1.msra.mxu0 0.0
    %1544 = vmatprep.subr.mxu0 0.0
    %1545 = vmatpush1.msra.mxu0 0.0
    %1546 = vmatprep.subr.mxu0 0.0
    %1547 = vmatpush1.msra.mxu0 0.0
    %1548 = vmatprep.subr.mxu0 0.0
    %1549 = vmatpush1.msra.mxu0 0.0
    %1550 = vmatprep.subr.mxu0 0.0
    %1551 = vmatpush1.msra.mxu0 0.0
    %1552 = vmatprep.subr.mxu0 0.0
    %1553 = vmatpush1.msra.mxu0 0.0
    %1554 = vmatprep.subr.mxu0 0.0
    %1555 = vmatpush1.msra.mxu0 0.0
    %1556 = vmatprep.subr.mxu0 0.0
    %1557 = vmatpush1.msra.mxu0 0.0
    %1558 = vmatprep.subr.mxu0 0.0
    %1559 = vmatpush1.msra.mxu0 0.0
    %1560 = vmatprep.subr.mxu0 0.0
    %1561 = vmatpush1.msra.mxu0 0.0
    %1562 = vmatprep.subr.mxu0 0.0
    %1563 = vmatpush1.msra.mxu0 0.0
    %1564 = vmatprep.subr.mxu0 0.0
    %1565 = vmatpush1.msra.mxu0 0.0
    %1566 = vmatprep.subr.mxu0 0.0
    %1567 = vmatpush1.msra.mxu0 0.0
    %1568 = vmatprep.subr.mxu0 0.0
    %1569 = vmatpush1.msra.mxu0 0.0
    %1570 = vmatprep.subr.mxu0 0.0
    %1571 = vmatpush1.msra.mxu0 0.0
    %1572 = vmatprep.subr.mxu0 0.0
    %1573 = vmatpush1.msra.mxu0 0.0
    %1574 = vmatprep.subr.mxu0 0.0
    %1575 = vmatpush1.msra.mxu0 0.0
    %1576 = vmatprep.subr.mxu0 0.0
    %1577 = vmatpush1.msra.mxu0 0.0
    %1578 = vmatprep.subr.mxu0 0.0
    %1579 = vmatpush1.msra.mxu0 0.0
    %1580 = vmatprep.subr.mxu0 0.0
    %1581 = vmatpush1.msra.mxu0 0.0
    %1582 = vmatprep.mubr.f32.mxu0 0.0
    %1583 = vmatmul.mubr.f32.gmra.mrb[0].mxu0 %v1516
    %v1584 = vpop.f32.mrb[0].mxu0
    %v1585 = vadd.f32 0.0, %v1584
    %v1586 = vpop.f32.mrb[0].mxu0
    %1587 = vdwg.mxu0
    %v1588 = vld [vmem:[#allocation5] sm:$0xff]
    %v1589 = vld [vmem:[#allocation5 + $0x8] sm:$0xff]
    %1591 = vset.pattern.permute.xlu0 2
    %1592 = vperm.xlu0 %1591, %v1402
    %v1593 = vpop.permute.xlu0 %1592
    %1596 = vset.pattern.permute.xlu0 2
    %1597 = vperm.xlu0 %1596, %v1404
    %v1598 = vpop.permute.xlu0 %1597
    %v1600 = vmul.f32 %v1593, %v1588
    %v1601 = vmul.f32 %v1598, %v1589
    %1604 = vrot.lane.b32.xlu0 %v1509, 16
    %v1605 = vpop.permute.xlu0 %1604
    %1606 = vrot.lane.b32.xlu0 %v1585, 16
    %v1607 = vpop.permute.xlu0 %1606
    %v1610 = vadd.f32 %v1600, %v1605
    %v1611 = vadd.f32 %v1601, %v1607
    %vm1612 = vcmask 195712
    %1613 = vst.msk [vmem:[#allocation5] sm:$0xff] %vm1612, %v1610
    %1614 = vst.msk [vmem:[#allocation5 + $0x8] sm:$0xff] %vm1612, %v1611
    %1615 = vst.msk [vmem:[#allocation3] sm:$0xff] %vm1433, %v1397
    %1616 = vst.msk [vmem:[#allocation3 + $0x8] sm:$0xff] %vm1433, %v1398
    %1617 = vrot.lane.b32.xlu0 %v479, 104
    %v1618 = vpop.permute.xlu0 %1617
    %1619 = vrot.lane.b32.xlu0 %v377, 104
    %v1620 = vpop.permute.xlu0 %1619
    %v1621 = vsel %vm481, %v1618, 0
    %v1623 = vsel %vm481, %v1620, 0
    %1625 = vmatprep.subr.mxu0 0.0
    %1626 = vmatpush1.xpose.msra.mxu0 %v1623
    %1627 = vmatprep.subr.mxu0 0.0
    %1628 = vmatpush1.xpose.msra.mxu0 0.0
    %1629 = vmatprep.subr.mxu0 0.0
    %1630 = vmatpush1.xpose.msra.mxu0 0.0
    %1631 = vmatprep.subr.mxu0 0.0
    %1632 = vmatpush1.xpose.msra.mxu0 0.0
    %1633 = vmatprep.subr.mxu0 0.0
    %1634 = vmatpush1.xpose.msra.mxu0 0.0
    %1635 = vmatprep.subr.mxu0 0.0
    %1636 = vmatpush1.xpose.msra.mxu0 0.0
    %1637 = vmatprep.subr.mxu0 0.0
    %1638 = vmatpush1.xpose.msra.mxu0 0.0
    %1639 = vmatprep.subr.mxu0 0.0
    %1640 = vmatpush1.xpose.msra.mxu0 0.0
    %1641 = vmatprep.subr.mxu0 0.0
    %1642 = vmatpush1.xpose.msra.mxu0 0.0
    %1643 = vmatprep.subr.mxu0 0.0
    %1644 = vmatpush1.xpose.msra.mxu0 0.0
    %1645 = vmatprep.subr.mxu0 0.0
    %1646 = vmatpush1.xpose.msra.mxu0 0.0
    %1647 = vmatprep.subr.mxu0 0.0
    %1648 = vmatpush1.xpose.msra.mxu0 0.0
    %1649 = vmatprep.subr.mxu0 0.0
    %1650 = vmatpush1.xpose.msra.mxu0 0.0
    %1651 = vmatprep.subr.mxu0 0.0
    %1652 = vmatpush1.xpose.msra.mxu0 0.0
    %1653 = vmatprep.subr.mxu0 0.0
    %1654 = vmatpush1.xpose.msra.mxu0 0.0
    %1655 = vmatprep.subr.mxu0 0.0
    %1656 = vmatpush1.xpose.msra.mxu0 0.0
    %1657 = vmatprep.subr.mxu0 0.0
    %1658 = vmatpush1.xpose.msra.mxu0 0.0
    %1659 = vmatprep.subr.mxu0 0.0
    %1660 = vmatpush1.xpose.msra.mxu0 0.0
    %1661 = vmatprep.subr.mxu0 0.0
    %1662 = vmatpush1.xpose.msra.mxu0 0.0
    %1663 = vmatprep.subr.mxu0 0.0
    %1664 = vmatpush1.xpose.msra.mxu0 0.0
    %1665 = vmatprep.subr.mxu0 0.0
    %1666 = vmatpush1.xpose.msra.mxu0 0.0
    %1667 = vmatprep.subr.mxu0 0.0
    %1668 = vmatpush1.xpose.msra.mxu0 0.0
    %1669 = vmatprep.subr.mxu0 0.0
    %1670 = vmatpush1.xpose.msra.mxu0 0.0
    %1671 = vmatprep.subr.mxu0 0.0
    %1672 = vmatpush1.xpose.msra.mxu0 0.0
    %1673 = vmatprep.subr.mxu0 0.0
    %1674 = vmatpush1.xpose.msra.mxu0 0.0
    %1675 = vmatprep.subr.mxu0 0.0
    %1676 = vmatpush1.xpose.msra.mxu0 0.0
    %1677 = vmatprep.subr.mxu0 0.0
    %1678 = vmatpush1.xpose.msra.mxu0 0.0
    %1679 = vmatprep.subr.mxu0 0.0
    %1680 = vmatpush1.xpose.msra.mxu0 0.0
    %1681 = vmatprep.subr.mxu0 0.0
    %1682 = vmatpush1.xpose.msra.mxu0 0.0
    %1683 = vmatprep.subr.mxu0 0.0
    %1684 = vmatpush1.xpose.msra.mxu0 0.0
    %1685 = vmatprep.subr.mxu0 0.0
    %1686 = vmatpush1.xpose.msra.mxu0 0.0
    %1687 = vmatprep.subr.mxu0 0.0
    %1688 = vmatpush1.xpose.msra.mxu0 0.0
    %1689 = vmatprep.mubr.f32.mxu0 0.0
    %1690 = vmatmul.mubr.f32.gmra.mrb[0].mxu0 %v1621
    %v1691 = vpop.f32.mrb[0].mxu0
    %v1692 = vadd.f32 0.0, %v1691
    %v1693 = vpop.f32.mrb[0].mxu0
    %1694 = vdwg.mxu0
    %1695 = vrot.lane.b32.xlu0 %v480, 104
    %v1696 = vpop.permute.xlu0 %1695
    %1697 = vrot.lane.b32.xlu0 %v382, 104
    %v1698 = vpop.permute.xlu0 %1697
    %v1699 = vsel %vm481, %v1696, 0
    %v1701 = vsel %vm481, %v1698, 0
    %1703 = vmatprep.subr.mxu0 0.0
    %1704 = vmatpush1.xpose.msra.mxu0 %v1701
    %1705 = vmatprep.subr.mxu0 0.0
    %1706 = vmatpush1.xpose.msra.mxu0 0.0
    %1707 = vmatprep.subr.mxu0 0.0
    %1708 = vmatpush1.xpose.msra.mxu0 0.0
    %1709 = vmatprep.subr.mxu0 0.0
    %1710 = vmatpush1.xpose.msra.mxu0 0.0
    %1711 = vmatprep.subr.mxu0 0.0
    %1712 = vmatpush1.xpose.msra.mxu0 0.0
    %1713 = vmatprep.subr.mxu0 0.0
    %1714 = vmatpush1.xpose.msra.mxu0 0.0
    %1715 = vmatprep.subr.mxu0 0.0
    %1716 = vmatpush1.xpose.msra.mxu0 0.0
    %1717 = vmatprep.subr.mxu0 0.0
    %1718 = vmatpush1.xpose.msra.mxu0 0.0
    %1719 = vmatprep.subr.mxu0 0.0
    %1720 = vmatpush1.xpose.msra.mxu0 0.0
    %1721 = vmatprep.subr.mxu0 0.0
    %1722 = vmatpush1.xpose.msra.mxu0 0.0
    %1723 = vmatprep.subr.mxu0 0.0
    %1724 = vmatpush1.xpose.msra.mxu0 0.0
    %1725 = vmatprep.subr.mxu0 0.0
    %1726 = vmatpush1.xpose.msra.mxu0 0.0
    %1727 = vmatprep.subr.mxu0 0.0
    %1728 = vmatpush1.xpose.msra.mxu0 0.0
    %1729 = vmatprep.subr.mxu0 0.0
    %1730 = vmatpush1.xpose.msra.mxu0 0.0
    %1731 = vmatprep.subr.mxu0 0.0
    %1732 = vmatpush1.xpose.msra.mxu0 0.0
    %1733 = vmatprep.subr.mxu0 0.0
    %1734 = vmatpush1.xpose.msra.mxu0 0.0
    %1735 = vmatprep.subr.mxu0 0.0
    %1736 = vmatpush1.xpose.msra.mxu0 0.0
    %1737 = vmatprep.subr.mxu0 0.0
    %1738 = vmatpush1.xpose.msra.mxu0 0.0
    %1739 = vmatprep.subr.mxu0 0.0
    %1740 = vmatpush1.xpose.msra.mxu0 0.0
    %1741 = vmatprep.subr.mxu0 0.0
    %1742 = vmatpush1.xpose.msra.mxu0 0.0
    %1743 = vmatprep.subr.mxu0 0.0
    %1744 = vmatpush1.xpose.msra.mxu0 0.0
    %1745 = vmatprep.subr.mxu0 0.0
    %1746 = vmatpush1.xpose.msra.mxu0 0.0
    %1747 = vmatprep.subr.mxu0 0.0
    %1748 = vmatpush1.xpose.msra.mxu0 0.0
    %1749 = vmatprep.subr.mxu0 0.0
    %1750 = vmatpush1.xpose.msra.mxu0 0.0
    %1751 = vmatprep.subr.mxu0 0.0
    %1752 = vmatpush1.xpose.msra.mxu0 0.0
    %1753 = vmatprep.subr.mxu0 0.0
    %1754 = vmatpush1.xpose.msra.mxu0 0.0
    %1755 = vmatprep.subr.mxu0 0.0
    %1756 = vmatpush1.xpose.msra.mxu0 0.0
    %1757 = vmatprep.subr.mxu0 0.0
    %1758 = vmatpush1.xpose.msra.mxu0 0.0
    %1759 = vmatprep.subr.mxu0 0.0
    %1760 = vmatpush1.xpose.msra.mxu0 0.0
    %1761 = vmatprep.subr.mxu0 0.0
    %1762 = vmatpush1.xpose.msra.mxu0 0.0
    %1763 = vmatprep.subr.mxu0 0.0
    %1764 = vmatpush1.xpose.msra.mxu0 0.0
    %1765 = vmatprep.subr.mxu0 0.0
    %1766 = vmatpush1.xpose.msra.mxu0 0.0
    %1767 = vmatprep.mubr.f32.mxu0 0.0
    %1768 = vmatmul.mubr.f32.gmra.mrb[0].mxu0 %v1699
    %v1769 = vpop.f32.mrb[0].mxu0
    %v1770 = vadd.f32 0.0, %v1769
    %v1771 = vpop.f32.mrb[0].mxu0
    %1772 = vdwg.mxu0
    %v1773 = vld [vmem:[#allocation3] sm:$0xff]
    %v1774 = vld [vmem:[#allocation3 + $0x8] sm:$0xff]
    %v1775 = vsel %vm481, %v1692, -inf
    %1776 = vmax.xlane.f32.xlu0 %v1775
    %v1777 = vpop.xlane.xlu0 %1776
    %v1778 = vsel %vm481, %v1770, -inf
    %1779 = vmax.xlane.f32.xlu0 %v1778
    %v1780 = vpop.xlane.xlu0 %1779
    %v1781 = vmax.f32 %v1773, %v1777
    %v1782 = vmax.f32 %v1774, %v1780
    %v1783 = vsub.f32 %v1773, %v1781
    %v1784 = vsub.f32 %v1774, %v1782
    %v1785 = vmul.f32 %v1783, 1.442695
    %v1786 = vpow.pop %v1785
    %v1787 = vmul.f32 %v1784, 1.442695
    %v1788 = vpow.pop %v1787
    %1790 = vset.pattern.permute.xlu0 3
    %1791 = vperm.xlu0 %1790, %v1781
    %v1792 = vpop.permute.xlu0 %1791
    %1795 = vset.pattern.permute.xlu0 3
    %1796 = vperm.xlu0 %1795, %v1782
    %v1797 = vpop.permute.xlu0 %1796
    %v1799 = vsub.f32 %v1692, %v1792
    %v1800 = vsub.f32 %v1770, %v1797
    %v1801 = vmul.f32 %v1799, 1.442695
    %v1802 = vpow.pop %v1801
    %v1803 = vmul.f32 %v1800, 1.442695
    %v1804 = vpow.pop %v1803
    %v1805 = vld [vmem:[#allocation4] sm:$0xff]
    %v1806 = vld [vmem:[#allocation4 + $0x8] sm:$0xff]
    %v1807 = vmul.f32 %v1786, %v1805
    %v1808 = vmul.f32 %v1788, %v1806
    %v1809 = vsel %vm481, %v1802, 0.0
    %1810 = vadd.xlane.f32.xlu0 %v1809
    %v1811 = vpop.xlane.xlu0 %1810
    %v1812 = vsel %vm481, %v1804, 0.0
    %1813 = vadd.xlane.f32.xlu0 %v1812
    %v1814 = vpop.xlane.xlu0 %1813
    %v1815 = vadd.f32 %v1807, %v1811
    %v1816 = vadd.f32 %v1808, %v1814
    %vm1817 = vcmask 31768
    %1818 = vst.msk [vmem:[#allocation4] sm:$0xff] %vm1817, %v1815
    %1819 = vst.msk [vmem:[#allocation4 + $0x8] sm:$0xff] %vm1817, %v1816
    %1820 = vrot.lane.b32.xlu0 %v471, 104
    %v1821 = vpop.permute.xlu0 %1820
    %v1824 = vsel %vm481, %v1802, 0
    %1826 = vmatprep.subr.mxu0 0.0
    %1827 = vmatpush1.msra.mxu0 %v1821
    %1828 = vmatprep.subr.mxu0 0.0
    %1829 = vmatpush1.msra.mxu0 0.0
    %1830 = vmatprep.subr.mxu0 0.0
    %1831 = vmatpush1.msra.mxu0 0.0
    %1832 = vmatprep.subr.mxu0 0.0
    %1833 = vmatpush1.msra.mxu0 0.0
    %1834 = vmatprep.subr.mxu0 0.0
    %1835 = vmatpush1.msra.mxu0 0.0
    %1836 = vmatprep.subr.mxu0 0.0
    %1837 = vmatpush1.msra.mxu0 0.0
    %1838 = vmatprep.subr.mxu0 0.0
    %1839 = vmatpush1.msra.mxu0 0.0
    %1840 = vmatprep.subr.mxu0 0.0
    %1841 = vmatpush1.msra.mxu0 0.0
    %1842 = vmatprep.subr.mxu0 0.0
    %1843 = vmatpush1.msra.mxu0 0.0
    %1844 = vmatprep.subr.mxu0 0.0
    %1845 = vmatpush1.msra.mxu0 0.0
    %1846 = vmatprep.subr.mxu0 0.0
    %1847 = vmatpush1.msra.mxu0 0.0
    %1848 = vmatprep.subr.mxu0 0.0
    %1849 = vmatpush1.msra.mxu0 0.0
    %1850 = vmatprep.subr.mxu0 0.0
    %1851 = vmatpush1.msra.mxu0 0.0
    %1852 = vmatprep.subr.mxu0 0.0
    %1853 = vmatpush1.msra.mxu0 0.0
    %1854 = vmatprep.subr.mxu0 0.0
    %1855 = vmatpush1.msra.mxu0 0.0
    %1856 = vmatprep.subr.mxu0 0.0
    %1857 = vmatpush1.msra.mxu0 0.0
    %1858 = vmatprep.subr.mxu0 0.0
    %1859 = vmatpush1.msra.mxu0 0.0
    %1860 = vmatprep.subr.mxu0 0.0
    %1861 = vmatpush1.msra.mxu0 0.0
    %1862 = vmatprep.subr.mxu0 0.0
    %1863 = vmatpush1.msra.mxu0 0.0
    %1864 = vmatprep.subr.mxu0 0.0
    %1865 = vmatpush1.msra.mxu0 0.0
    %1866 = vmatprep.subr.mxu0 0.0
    %1867 = vmatpush1.msra.mxu0 0.0
    %1868 = vmatprep.subr.mxu0 0.0
    %1869 = vmatpush1.msra.mxu0 0.0
    %1870 = vmatprep.subr.mxu0 0.0
    %1871 = vmatpush1.msra.mxu0 0.0
    %1872 = vmatprep.subr.mxu0 0.0
    %1873 = vmatpush1.msra.mxu0 0.0
    %1874 = vmatprep.subr.mxu0 0.0
    %1875 = vmatpush1.msra.mxu0 0.0
    %1876 = vmatprep.subr.mxu0 0.0
    %1877 = vmatpush1.msra.mxu0 0.0
    %1878 = vmatprep.subr.mxu0 0.0
    %1879 = vmatpush1.msra.mxu0 0.0
    %1880 = vmatprep.subr.mxu0 0.0
    %1881 = vmatpush1.msra.mxu0 0.0
    %1882 = vmatprep.subr.mxu0 0.0
    %1883 = vmatpush1.msra.mxu0 0.0
    %1884 = vmatprep.subr.mxu0 0.0
    %1885 = vmatpush1.msra.mxu0 0.0
    %1886 = vmatprep.subr.mxu0 0.0
    %1887 = vmatpush1.msra.mxu0 0.0
    %1888 = vmatprep.subr.mxu0 0.0
    %1889 = vmatpush1.msra.mxu0 0.0
    %1890 = vmatprep.mubr.f32.mxu0 0.0
    %1891 = vmatmul.mubr.f32.gmra.mrb[0].mxu0 %v1824
    %v1892 = vpop.f32.mrb[0].mxu0
    %v1893 = vadd.f32 0.0, %v1892
    %v1894 = vpop.f32.mrb[0].mxu0
    %1895 = vdwg.mxu0
    %1896 = vrot.lane.b32.xlu0 %v476, 104
    %v1897 = vpop.permute.xlu0 %1896
    %v1900 = vsel %vm481, %v1804, 0
    %1902 = vmatprep.subr.mxu0 0.0
    %1903 = vmatpush1.msra.mxu0 %v1897
    %1904 = vmatprep.subr.mxu0 0.0
    %1905 = vmatpush1.msra.mxu0 0.0
    %1906 = vmatprep.subr.mxu0 0.0
    %1907 = vmatpush1.msra.mxu0 0.0
    %1908 = vmatprep.subr.mxu0 0.0
    %1909 = vmatpush1.msra.mxu0 0.0
    %1910 = vmatprep.subr.mxu0 0.0
    %1911 = vmatpush1.msra.mxu0 0.0
    %1912 = vmatprep.subr.mxu0 0.0
    %1913 = vmatpush1.msra.mxu0 0.0
    %1914 = vmatprep.subr.mxu0 0.0
    %1915 = vmatpush1.msra.mxu0 0.0
    %1916 = vmatprep.subr.mxu0 0.0
    %1917 = vmatpush1.msra.mxu0 0.0
    %1918 = vmatprep.subr.mxu0 0.0
    %1919 = vmatpush1.msra.mxu0 0.0
    %1920 = vmatprep.subr.mxu0 0.0
    %1921 = vmatpush1.msra.mxu0 0.0
    %1922 = vmatprep.subr.mxu0 0.0
    %1923 = vmatpush1.msra.mxu0 0.0
    %1924 = vmatprep.subr.mxu0 0.0
    %1925 = vmatpush1.msra.mxu0 0.0
    %1926 = vmatprep.subr.mxu0 0.0
    %1927 = vmatpush1.msra.mxu0 0.0
    %1928 = vmatprep.subr.mxu0 0.0
    %1929 = vmatpush1.msra.mxu0 0.0
    %1930 = vmatprep.subr.mxu0 0.0
    %1931 = vmatpush1.msra.mxu0 0.0
    %1932 = vmatprep.subr.mxu0 0.0
    %1933 = vmatpush1.msra.mxu0 0.0
    %1934 = vmatprep.subr.mxu0 0.0
    %1935 = vmatpush1.msra.mxu0 0.0
    %1936 = vmatprep.subr.mxu0 0.0
    %1937 = vmatpush1.msra.mxu0 0.0
    %1938 = vmatprep.subr.mxu0 0.0
    %1939 = vmatpush1.msra.mxu0 0.0
    %1940 = vmatprep.subr.mxu0 0.0
    %1941 = vmatpush1.msra.mxu0 0.0
    %1942 = vmatprep.subr.mxu0 0.0
    %1943 = vmatpush1.msra.mxu0 0.0
    %1944 = vmatprep.subr.mxu0 0.0
    %1945 = vmatpush1.msra.mxu0 0.0
    %1946 = vmatprep.subr.mxu0 0.0
    %1947 = vmatpush1.msra.mxu0 0.0
    %1948 = vmatprep.subr.mxu0 0.0
    %1949 = vmatpush1.msra.mxu0 0.0
    %1950 = vmatprep.subr.mxu0 0.0
    %1951 = vmatpush1.msra.mxu0 0.0
    %1952 = vmatprep.subr.mxu0 0.0
    %1953 = vmatpush1.msra.mxu0 0.0
    %1954 = vmatprep.subr.mxu0 0.0
    %1955 = vmatpush1.msra.mxu0 0.0
    %1956 = vmatprep.subr.mxu0 0.0
    %1957 = vmatpush1.msra.mxu0 0.0
    %1958 = vmatprep.subr.mxu0 0.0
    %1959 = vmatpush1.msra.mxu0 0.0
    %1960 = vmatprep.subr.mxu0 0.0
    %1961 = vmatpush1.msra.mxu0 0.0
    %1962 = vmatprep.subr.mxu0 0.0
    %1963 = vmatpush1.msra.mxu0 0.0
    %1964 = vmatprep.subr.mxu0 0.0
    %1965 = vmatpush1.msra.mxu0 0.0
    %1966 = vmatprep.mubr.f32.mxu0 0.0
    %1967 = vmatmul.mubr.f32.gmra.mrb[0].mxu0 %v1900
    %v1968 = vpop.f32.mrb[0].mxu0
    %v1969 = vadd.f32 0.0, %v1968
    %v1970 = vpop.f32.mrb[0].mxu0
    %1971 = vdwg.mxu0
    %v1972 = vld [vmem:[#allocation5] sm:$0xff]
    %v1973 = vld [vmem:[#allocation5 + $0x8] sm:$0xff]
    %1975 = vset.pattern.permute.xlu0 3
    %1976 = vperm.xlu0 %1975, %v1786
    %v1977 = vpop.permute.xlu0 %1976
    %1980 = vset.pattern.permute.xlu0 3
    %1981 = vperm.xlu0 %1980, %v1788
    %v1982 = vpop.permute.xlu0 %1981
    %v1984 = vmul.f32 %v1977, %v1972
    %v1985 = vmul.f32 %v1982, %v1973
    %1988 = vrot.lane.b32.xlu0 %v1893, 24
    %v1989 = vpop.permute.xlu0 %1988
    %1990 = vrot.lane.b32.xlu0 %v1969, 24
    %v1991 = vpop.permute.xlu0 %1990
    %v1994 = vadd.f32 %v1984, %v1989
    %v1995 = vadd.f32 %v1985, %v1991
    %vm1996 = vcmask 261312
    %1997 = vst.msk [vmem:[#allocation5] sm:$0xff] %vm1996, %v1994
    %1998 = vst.msk [vmem:[#allocation5 + $0x8] sm:$0xff] %vm1996, %v1995
    %1999 = vst.msk [vmem:[#allocation3] sm:$0xff] %vm1817, %v1781
    %2000 = vst.msk [vmem:[#allocation3 + $0x8] sm:$0xff] %vm1817, %v1782
    // Predicated region
    $region94: #{tpu_custom_call.1} parent=1 // pred_check
      %p2001 = pneg %p180
    $region95: #{tpu_custom_call.1} parent=1 // pred_check_branch
      %2003 = sbr.rel (%p2001) target = $region97
    $region96: #{tpu_custom_call.1} parent=1 // pred_region
      %v2004 = vld [vmem:[#allocation5] sm:$0xff]
      %v2005 = vld [vmem:[#allocation5 + $0x8] sm:$0xff]
      %v2006 = vld [vmem:[#allocation4] sm:$0xff]
      %v2007 = vld [vmem:[#allocation4 + $0x8] sm:$0xff]
      %2009 = vset.pattern.permute.xlu0 0
      %2010 = vperm.xlu0 %2009, %v2006
      %v2011 = vpop.permute.xlu0 %2010
      %2014 = vset.pattern.permute.xlu0 0
      %2015 = vperm.xlu0 %2014, %v2007
      %v2016 = vpop.permute.xlu0 %2015
      %v2018 = vrcp.pop %v2011
      %v2019 = vmul.f32 %v2004, %v2018
      %v2020 = vrcp.pop %v2016
      %v2021 = vmul.f32 %v2005, %v2020
      %2022 = vst.msk [vmem:[#allocation5] sm:$0xff] %vm481, %v2019
      %2023 = vst.msk [vmem:[#allocation5 + $0x8] sm:$0xff] %vm481, %v2021
      %v2024 = vld [vmem:[#allocation5] sm:$0xff]
      %v2025 = vld [vmem:[#allocation5 + $0x8] sm:$0xff]
      %v2026 = vld [vmem:[#allocation4] sm:$0xff]
      %v2027 = vld [vmem:[#allocation4 + $0x8] sm:$0xff]
      %2029 = vset.pattern.permute.xlu0 1
      %2030 = vperm.xlu0 %2029, %v2026
      %v2031 = vpop.permute.xlu0 %2030
      %2034 = vset.pattern.permute.xlu0 1
      %2035 = vperm.xlu0 %2034, %v2027
      %v2036 = vpop.permute.xlu0 %2035
      %v2038 = vrcp.pop %v2031
      %v2039 = vmul.f32 %v2024, %v2038
      %v2040 = vrcp.pop %v2036
      %v2041 = vmul.f32 %v2025, %v2040
      %2042 = vst.msk [vmem:[#allocation5] sm:$0xff] %vm1228, %v2039
      %2043 = vst.msk [vmem:[#allocation5 + $0x8] sm:$0xff] %vm1228, %v2041
      %v2044 = vld [vmem:[#allocation5] sm:$0xff]
      %v2045 = vld [vmem:[#allocation5 + $0x8] sm:$0xff]
      %v2046 = vld [vmem:[#allocation4] sm:$0xff]
      %v2047 = vld [vmem:[#allocation4 + $0x8] sm:$0xff]
      %2049 = vset.pattern.permute.xlu0 2
      %2050 = vperm.xlu0 %2049, %v2046
      %v2051 = vpop.permute.xlu0 %2050
      %2054 = vset.pattern.permute.xlu0 2
      %2055 = vperm.xlu0 %2054, %v2047
      %v2056 = vpop.permute.xlu0 %2055
      %v2058 = vrcp.pop %v2051
      %v2059 = vmul.f32 %v2044, %v2058
      %v2060 = vrcp.pop %v2056
      %v2061 = vmul.f32 %v2045, %v2060
      %2062 = vst.msk [vmem:[#allocation5] sm:$0xff] %vm1612, %v2059
      %2063 = vst.msk [vmem:[#allocation5 + $0x8] sm:$0xff] %vm1612, %v2061
      %v2064 = vld [vmem:[#allocation5] sm:$0xff]
      %v2065 = vld [vmem:[#allocation5 + $0x8] sm:$0xff]
      %v2066 = vld [vmem:[#allocation4] sm:$0xff]
      %v2067 = vld [vmem:[#allocation4 + $0x8] sm:$0xff]
      %2069 = vset.pattern.permute.xlu0 3
      %2070 = vperm.xlu0 %2069, %v2066
      %v2071 = vpop.permute.xlu0 %2070
      %2074 = vset.pattern.permute.xlu0 3
      %2075 = vperm.xlu0 %2074, %v2067
      %v2076 = vpop.permute.xlu0 %2075
      %v2078 = vrcp.pop %v2071
      %v2079 = vmul.f32 %v2064, %v2078
      %v2080 = vrcp.pop %v2076
      %v2081 = vmul.f32 %v2065, %v2080
      %2082 = vst.msk [vmem:[#allocation5] sm:$0xff] %vm1996, %v2079
      %2083 = vst.msk [vmem:[#allocation5 + $0x8] sm:$0xff] %vm1996, %v2081
      %v2084 = vld [vmem:[#allocation5] sm:$0xff]
      %v2085 = vld [vmem:[#allocation5 + $0x8] sm:$0xff]
      %v2086 = vld [vmem:[#allocation17] sm:$0xff]
      %v2087 = vld [vmem:[#allocation17 + $0x8] sm:$0xff]
      %v2088 = vld [vmem:[#allocation17 + $0x10] sm:$0xff]
      %v2089 = vld [vmem:[#allocation17 + $0x18] sm:$0xff]
      %v2090 = vld [vmem:[#allocation23] sm:$0x1]
      %v2092 = vlaneseq
      %v2093 = vshrl.u32 %v2092, 7
      %v2094 = vsub.s32 0, %v2093
      %v2095 = vrot.slane %v2090, %v2094
      %v2098 = vsel %vm303, %v2084, 0
      %v2101 = vsel %vm303, %v2085, 0
      %2103 = vmatprep.subr.mxu0 0.0
      %2104 = vmatpush1.msra.mxu0 %v2086
      %2105 = vmatprep.subr.mxu0 0.0
      %2106 = vmatpush1.msra.mxu0 %v2087
      %2107 = vmatprep.subr.mxu0 0.0
      %2108 = vmatpush1.msra.mxu0 %v2088
      %2109 = vmatprep.subr.mxu0 0.0
      %2110 = vmatpush1.msra.mxu0 %v2089
      %2111 = vmatprep.subr.mxu0 0.0
      %2112 = vmatpush1.msra.mxu0 0.0
      %2113 = vmatprep.subr.mxu0 0.0
      %2114 = vmatpush1.msra.mxu0 0.0
      %2115 = vmatprep.subr.mxu0 0.0
      %2116 = vmatpush1.msra.mxu0 0.0
      %2117 = vmatprep.subr.mxu0 0.0
      %2118 = vmatpush1.msra.mxu0 0.0
      %2119 = vmatprep.subr.mxu0 0.0
      %2120 = vmatpush1.msra.mxu0 0.0
      %2121 = vmatprep.subr.mxu0 0.0
      %2122 = vmatpush1.msra.mxu0 0.0
      %2123 = vmatprep.subr.mxu0 0.0
      %2124 = vmatpush1.msra.mxu0 0.0
      %2125 = vmatprep.subr.mxu0 0.0
      %2126 = vmatpush1.msra.mxu0 0.0
      %2127 = vmatprep.subr.mxu0 0.0
      %2128 = vmatpush1.msra.mxu0 0.0
      %2129 = vmatprep.subr.mxu0 0.0
      %2130 = vmatpush1.msra.mxu0 0.0
      %2131 = vmatprep.subr.mxu0 0.0
      %2132 = vmatpush1.msra.mxu0 0.0
      %2133 = vmatprep.subr.mxu0 0.0
      %2134 = vmatpush1.msra.mxu0 0.0
      %2135 = vmatprep.subr.mxu0 0.0
      %2136 = vmatpush1.msra.mxu0 0.0
      %2137 = vmatprep.subr.mxu0 0.0
      %2138 = vmatpush1.msra.mxu0 0.0
      %2139 = vmatprep.subr.mxu0 0.0
      %2140 = vmatpush1.msra.mxu0 0.0
      %2141 = vmatprep.subr.mxu0 0.0
      %2142 = vmatpush1.msra.mxu0 0.0
      %2143 = vmatprep.subr.mxu0 0.0
      %2144 = vmatpush1.msra.mxu0 0.0
      %2145 = vmatprep.subr.mxu0 0.0
      %2146 = vmatpush1.msra.mxu0 0.0
      %2147 = vmatprep.subr.mxu0 0.0
      %2148 = vmatpush1.msra.mxu0 0.0
      %2149 = vmatprep.subr.mxu0 0.0
      %2150 = vmatpush1.msra.mxu0 0.0
      %2151 = vmatprep.subr.mxu0 0.0
      %2152 = vmatpush1.msra.mxu0 0.0
      %2153 = vmatprep.subr.mxu0 0.0
      %2154 = vmatpush1.msra.mxu0 0.0
      %2155 = vmatprep.subr.mxu0 0.0
      %2156 = vmatpush1.msra.mxu0 0.0
      %2157 = vmatprep.subr.mxu0 0.0
      %2158 = vmatpush1.msra.mxu0 0.0
      %2159 = vmatprep.subr.mxu0 0.0
      %2160 = vmatpush1.msra.mxu0 0.0
      %2161 = vmatprep.subr.mxu0 0.0
      %2162 = vmatpush1.msra.mxu0 0.0
      %2163 = vmatprep.subr.mxu0 0.0
      %2164 = vmatpush1.msra.mxu0 0.0
      %2165 = vmatprep.subr.mxu0 0.0
      %2166 = vmatpush1.msra.mxu0 0.0
      %2167 = vmatprep.mubr.f32.mxu0 0.0
      %2168 = vmatmul.mubr.f32.gmra.mrb[0].mxu0 %v2098
      %v2169 = vpop.f32.mrb[0].mxu0
      %v2170 = vadd.f32 %v2095, %v2169
      %v2171 = vpop.f32.mrb[0].mxu0
      %2172 = vmatprep.mubr.f32.mxu0 0.0
      %2173 = vmatmul.mubr.f32.gmra.mrb[0].mxu0 %v2101
      %v2174 = vpop.f32.mrb[0].mxu0
      %v2175 = vadd.f32 %v2095, %v2174
      %v2176 = vpop.f32.mrb[0].mxu0
      %2177 = vdwg.mxu0
      %2178 = vst.msk [vmem:[#allocation24] sm:$0xff] %vm303, %v2170
      %2179 = vst.msk [vmem:[#allocation24 + $0x8] sm:$0xff] %vm303, %v2175
    $region97: #{tpu_custom_call.1} parent=1 // pred_fallthru
      _
    // Predicated region
    $region98: #{tpu_custom_call.1} parent=1 // pred_check
      _
    $region99: #{tpu_custom_call.1} parent=1 // pred_check_branch
      %2181 = sbr.rel (0) target = $region101
    $region100: #{tpu_custom_call.1} parent=1 // pred_region
      %s2183 = ssub.s32 256, 256
      %2184 = vsyncadd [#allocation8], %s2183
      %s2185 = sshll.u32 [#allocation24], 4
      %s2186 = int_to_ptr.vmem [resolvable:$true] %s2185
      %2191 = dma.vmem_to_hbm [thread:$0]  %s2186, 256, %s11, [#allocation8], 128, 128, 8
    $region101: #{tpu_custom_call.1} parent=1 // pred_fallthru
      _
    // Predicated region
    $region102: #{tpu_custom_call.1} parent=1 // pred_check
      _
    $region103: #{tpu_custom_call.1} parent=1 // pred_check_branch
      %2193 = sbr.rel (0) target = $region105
    $region104: #{tpu_custom_call.1} parent=1 // pred_region
      %2194 = dma.done [#allocation8], 256
    $region105: #{tpu_custom_call.1} parent=1 // pred_fallthru
      _
    %2195 = vsyncpa [#allocation7], 1
    %2196 = vsyncpa [#allocation10], 1
    %2197 = vsyncpa [#allocation13], 1
    %2198 = vsyncpa [#allocation16], 1
    %2199 = vsyncpa [#allocation19], 1
    %2200 = vsyncpa [#allocation22], 1
    %2201 = vsyncpa [#allocation8], 1

</llo_original>
